<compile_context>
chip_gen: v5e
topology: v5e:2x2
jax: 0.10.0
libtpu: 0.0.40
codegen_flags: <defaults>
</compile_context>

<pallas_src>
import functools
import math

import jax
import jax.numpy as jnp
from jax import lax
from jax.experimental import pallas as pl
from jax.experimental.pallas import tpu as pltpu


# ------------------------------ kernel helpers ------------------------------

def _lse(x, axis):
    m = jnp.max(x, axis=axis, keepdims=True)
    return m + jnp.log(jnp.sum(jnp.exp(x - m), axis=axis, keepdims=True))


# -------------------------------- fused kernel ------------------------------

def fused_kernel(x_ref, xT_ref, yT_ref, out_ref, *, T, M, d, obs_idx, Ni,
                 Ntot, eps, logZ, sigma, sigma_cst, n_iter, atol, rtol,
                 thresh):
    x_all = x_ref[...].astype(jnp.float32)      # (T, M, d)     M on sublanes
    xT_all = xT_ref[...].astype(jnp.float32)    # (T, d, M)     M on lanes
    yT = yT_ref[...].astype(jnp.float32)        # (d_obs, Ntot) obs on lanes

    # ---------------- FitLoss + ConstrainLoss (shared distances) -----------
    # D[t, m, c] = ||x[t, m, :obs_idx] - obs[c]||^2, accumulated per feature
    # (exact differences; no ||a||^2+||b||^2-2ab cancellation).
    D = jnp.zeros((T, M, Ntot), jnp.float32)
    for k in range(obs_idx):
        diff = x_all[:, :, k:k + 1] - yT[None, k:k + 1, :]   # (T,M,1)-(1,1,Ntot)
        D = D + diff * diff

    # ConstrainLoss: logsumexp over ALL observations per (t, m) row.
    C_cst = -D / (2.0 * sigma_cst * sigma_cst) + math.log(1.0 / Ntot)
    cst_sum = jnp.sum(_lse(C_cst, axis=2))

    # FitLoss: per time t, logsumexp over the M particles for the Ni
    # observation columns of that time (block diagonal of D).
    fit_sum = jnp.float32(0.0)
    for t in range(T):
        blk = (-D[t, :, t * Ni:(t + 1) * Ni] / (2.0 * sigma * sigma)
               + math.log(1.0 / M))                              # (M, Ni)
        fit_sum = fit_sum + jnp.sum(_lse(blk, axis=0))

    out_ref[1] = fit_sum
    out_ref[2] = cst_sum

    # ------------------- batched Sinkhorn over the T-1 pairs ----------------
    if T > 1:
        B = T - 1
        inv_M = 1.0 / M
        log_w = math.log(inv_M)

        # Cb[b, p, q] = 0.5 * ||x[b, p] - x[b+1, q]||^2 (exact, per feature).
        Cb = jnp.zeros((B, M, M), jnp.float32)
        for k in range(d):
            diff = x_all[:-1, :, k:k + 1] - xT_all[1:, k:k + 1, :]
            Cb = Cb + diff * diff
        Cb = 0.5 * Cb

        def getK(a_pot, b_pot):
            return jnp.exp(-(Cb + a_pot + b_pot) / eps - logZ + 2.0 * log_w)

        zeros_col = jnp.zeros((B, M, 1), jnp.float32)
        zeros_row = jnp.zeros((B, 1, M), jnp.float32)
        K0 = getK(zeros_col, zeros_row)
        KTu0 = jnp.sum(K0, axis=1, keepdims=True)          # col sums, u = 1
        init = (jnp.int32(0),
                jnp.ones((B, M, 1), jnp.float32),          # u
                jnp.ones((B, 1, M), jnp.float32),          # v
                zeros_col, zeros_row,                      # a, b potentials
                KTu0,                                      # carried K^T u
                jnp.zeros((B, 1, 1), jnp.float32),         # per-pair done flag
                jnp.float32(0.0))                          # all-done scalar

        def cond_fn(carry):
            it = carry[0]
            all_done = carry[7]
            return jnp.logical_and(it < n_iter, all_done < 0.5)

        def body_fn(carry):
            it, u, v, a_pot, b_pot, KTu, done, _ = carry
            # Reference-faithful: K always derived from (C, a, b).
            K = getK(a_pot, b_pot)                                    # (B,M,M)
            v_new = inv_M / KTu                                       # (B,1,M)
            u_new = inv_M / jnp.sum(K * v_new, axis=2, keepdims=True) # (B,M,1)
            KTu_new = jnp.sum(K * u_new, axis=1, keepdims=True)       # (B,1,M)
            # Balanced convergence test: ||v (K^T u) - 1/M||_inf per pair.
            err = jnp.max(jnp.abs(v_new * KTu_new - inv_M),
                          axis=2, keepdims=True)                      # (B,1,1)
            newly = jnp.logical_or(err < atol, err * M < rtol)
            umax = jnp.max(jnp.abs(u_new), axis=1, keepdims=True)
            vmax = jnp.max(jnp.abs(v_new), axis=2, keepdims=True)
            absorb = jnp.logical_and(jnp.maximum(umax, vmax) > thresh,
                                     jnp.logical_not(newly))
            a_new = jnp.where(absorb, a_pot - eps * jnp.log(u_new), a_pot)
            b_new = jnp.where(absorb, b_pot - eps * jnp.log(v_new), b_pot)
            u2 = jnp.where(absorb, 1.0, u_new)
            v2 = jnp.where(absorb, 1.0, v_new)
            # Column sums of next iteration's K*u: unchanged, or after an
            # absorption colsum(K*u*v) == (K^T u_new) * v_new exactly.
            KTu2 = jnp.where(absorb, KTu_new * v_new, KTu_new)
            upd = done < 0.5                      # freeze converged problems
            done_next = jnp.maximum(done, newly.astype(jnp.float32))
            all_done = jnp.min(done_next)
            return (it + 1,
                    jnp.where(upd, u2, u), jnp.where(upd, v2, v),
                    jnp.where(upd, a_new, a_pot), jnp.where(upd, b_new, b_pot),
                    jnp.where(upd, KTu2, KTu),
                    done_next, all_done)

        _, u, v, a_pot, b_pot, _, _, _ = lax.while_loop(cond_fn, body_fn, init)

        # obj_dual (balanced case, F_indicator_star), summed over the B pairs.
        f = -eps * jnp.log(u) + a_pot                                 # (B,M,1)
        g = -eps * jnp.log(v) + b_pot                                 # (B,1,M)
        f_cts = eps * _lse((-Cb - g) / eps + log_w, axis=2) - eps * logZ
        g_cts = eps * _lse((-Cb - f) / eps + log_w, axis=1) - eps * logZ
        plan = jnp.exp(-(Cb + f_cts + g_cts) / eps - logZ + 2.0 * log_w)
        reg_sum = (-(jnp.sum(f_cts) + jnp.sum(g_cts)) * inv_M
                   - eps * jnp.sum(plan))
        out_ref[0] = reg_sum
    else:
        out_ref[0] = jnp.float32(0.0)


# ---------------------------------- wrapper ----------------------------------

def traj_loss_forward(x, x_obs_by_t, *, obs_idx, dt, tau, sigma, sigma_cst,
                      lamda_reg, lamda_cst, sinkhorn_iters,
                      atol=1e-4, rtol=1e-4, thresh=100.0):
    T, M, d = x.shape
    _, Ni, d_obs = x_obs_by_t.shape
    assert d_obs == obs_idx
    Ntot = T * Ni
    B = max(T - 1, 0)
    eps = tau * dt
    logZ = math.log((2.0 * math.pi * eps) ** (d / 2.0))

    x = x.astype(jnp.float32)
    xT = jnp.transpose(x, (0, 2, 1))                              # (T, d, M)
    y_allT = jnp.transpose(
        x_obs_by_t.reshape(Ntot, d_obs).astype(jnp.float32))      # (d_obs, Ntot)

    kernel = functools.partial(
        fused_kernel, T=T, M=M, d=d, obs_idx=obs_idx, Ni=Ni, Ntot=Ntot,
        eps=eps, logZ=logZ, sigma=sigma, sigma_cst=sigma_cst,
        n_iter=sinkhorn_iters, atol=atol, rtol=rtol, thresh=thresh)

    # Generation-aware VMEM budget (64 MiB/TC on v7x, 128 MiB on v5e/v6e).
    try:
        vmem_limit = int(pltpu.get_tpu_info().vmem_capacity_bytes * 5 // 8)
    except Exception:  # pragma: no cover - conservative fallback
        vmem_limit = 32 * 1024 * 1024
    vmem_limit = min(vmem_limit, 96 * 1024 * 1024)

    cost = pl.CostEstimate(
        flops=int(B * sinkhorn_iters * 10 * M * M
                  + B * M * M * (3 * d + 30)
                  + T * M * Ntot * (3 * obs_idx + 10)),
        transcendentals=int(B * (sinkhorn_iters + 3) * M * M
                            + 2 * T * M * Ntot),
        bytes_accessed=int(4 * (x.size + xT.size + y_allT.size + 3)))

    sums = pl.pallas_call(
        kernel,
        out_shape=jax.ShapeDtypeStruct((3,), jnp.float32),
        in_specs=[pl.BlockSpec(memory_space=pltpu.MemorySpace.VMEM)] * 3,
        out_specs=pl.BlockSpec(memory_space=pltpu.MemorySpace.SMEM),
        compiler_params=pltpu.CompilerParams(vmem_limit_bytes=vmem_limit),
        cost_estimate=cost,
    )(x, xT, y_allT)

    loss_reg = sums[0] / dt            # PathsLoss: sum_i SinkhornLoss_i / dt
    loss_fit = -sums[1] / Ntot         # sum_i w_i * FitLoss_i (w_i = Ni/Ntot)
    loss_cst = -sums[2] / (T * M)      # ConstrainLoss (x_w = 1/(T*M))
    return lamda_reg * loss_reg + loss_fit + lamda_cst * loss_cst


# ----------------------------- pure-JAX reference ----------------------------

def _ref_sinkhorn_pair(xi, xj, eps, logZ, n_iter, atol, rtol, thresh):
    M = xi.shape[0]
    C = jnp.sum((xi[:, None, :] - xj[None, :, :]) ** 2, -1) / 2.0
    w = jnp.full((M,), 1.0 / M)

    def getK(a, b):
        return (jnp.exp(-(C + a[:, None] + b[None, :]) / eps - logZ)
                * (w[:, None] * w[None, :]))

    def body(_, carry):
        u, v, a, b, K, done = carry
        v_new = w / (K.T @ u)
        u_new = w / (K @ v_new)
        err = jnp.max(jnp.abs(v_new * (K.T @ u_new) - w))
        newly_done = (err < atol) | (err * M < rtol)
        big = jnp.maximum(jnp.max(jnp.abs(u_new)), jnp.max(jnp.abs(v_new))) > thresh
        absorb = big & (~newly_done)
        a_abs = a - eps * jnp.log(u_new)
        b_abs = b - eps * jnp.log(v_new)
        K_abs = getK(a_abs, b_abs)
        return (jnp.where(done, u, jnp.where(absorb, 1.0, u_new)),
                jnp.where(done, v, jnp.where(absorb, 1.0, v_new)),
                jnp.where(done, a, jnp.where(absorb, a_abs, a)),
                jnp.where(done, b, jnp.where(absorb, b_abs, b)),
                jnp.where(done, K, jnp.where(absorb, K_abs, K)),
                done | newly_done)

    z = jnp.zeros((M,))
    init = (jnp.ones((M,)), jnp.ones((M,)), z, z, getK(z, z), jnp.array(False))
    u, v, a, b, K, _ = lax.fori_loop(0, n_iter, body, init)
    f = -eps * jnp.log(u) + a
    g = -eps * jnp.log(v) + b
    f_cts = eps * jax.nn.logsumexp((-C - g[None, :]) / eps + jnp.log(w)[None, :],
                                   axis=1) - eps * logZ
    g_cts = eps * jax.nn.logsumexp((-C - f[:, None]) / eps + jnp.log(w)[:, None],
                                   axis=0) - eps * logZ
    plan = (jnp.exp(-(C + f_cts[:, None] + g_cts[None, :]) / eps - logZ)
            * (w[:, None] * w[None, :]))
    return -(f_cts @ w) - (g_cts @ w) - eps * jnp.sum(plan)


def traj_loss_ref(x, x_obs_by_t, *, obs_idx, dt, tau, sigma, sigma_cst,
                  lamda_reg, lamda_cst, sinkhorn_iters):
    T, M, d = x.shape
    _, Ni, d_obs = x_obs_by_t.shape
    Ntot = T * Ni
    eps = tau * dt
    logZ = math.log((2.0 * math.pi * eps) ** (d / 2.0))

    reg = sum(_ref_sinkhorn_pair(x[i], x[i + 1], eps, logZ, sinkhorn_iters,
                                 1e-4, 1e-4, 100.0) for i in range(T - 1)) / dt

    fit = 0.0
    for i in range(T):
        xi = x[i, :, :obs_idx]
        yi = x_obs_by_t[i]
        C = (-jnp.sum((xi[:, None, :] - yi[None, :, :]) ** 2, -1)
             / (2.0 * sigma ** 2) + math.log(1.0 / M))
        fit = fit + (Ni / Ntot) * (-jnp.mean(jax.nn.logsumexp(C, axis=0)))

    xf = x[:, :, :obs_idx].reshape(T * M, d_obs)
    yf = x_obs_by_t.reshape(Ntot, d_obs)
    C = (-jnp.sum((xf[:, None, :] - yf[None, :, :]) ** 2, -1)
         / (2.0 * sigma_cst ** 2) + math.log(1.0 / Ntot))
    cst = -jnp.mean(jax.nn.logsumexp(C, axis=1))

    return lamda_reg * reg + fit + lamda_cst * cst


# ------------------------------------ main -----------------------------------

if __name__ == "__main__":
    # Small deterministic shapes consistent with TrajLoss.__init__:
    #   x0: (T, M, d); x_obs: (T*Ni, obs_idx) with t_idx_obs sorted, Ni per time.
    T, M, d = 4, 16, 4
    obs_idx = 2
    Ni = 8

    key = jax.random.PRNGKey(0)
    k1, k2 = jax.random.split(key)
    x0 = 0.3 * jax.random.normal(k1, (T, M, d), dtype=jnp.float32)
    x_obs = 0.3 * jax.random.normal(k2, (T * Ni, obs_idx), dtype=jnp.float32)
    x_obs_by_t = x_obs.reshape(T, Ni, obs_idx)   # t_idx_obs = [0]*Ni + [1]*Ni + ...

    hp = dict(obs_idx=obs_idx, dt=0.5, tau=2.0, sigma=0.5, sigma_cst=0.5,
              lamda_reg=1.0, lamda_cst=0.5, sinkhorn_iters=20)

    fwd = jax.jit(functools.partial(traj_loss_forward, **hp))
    total = jax.block_until_ready(fwd(x0, x_obs_by_t))

    # Sanity check against a pure-JAX reference of the same math.
    ref = jax.block_until_ready(traj_loss_ref(x0, x_obs_by_t, **hp))
    assert bool(jnp.isfinite(total)), "non-finite kernel output"
    assert abs(float(total) - float(ref)) <= 1e-3 + 1e-2 * abs(float(ref)), (
        float(total), float(ref))

    # TODO(synk): SinkhornLoss.iters_used and the unbalanced / warm-start /
    # branching_rate_fn paths are not exposed (unused by TrajLoss defaults).
    # TODO(synk): everything is VMEM-resident; a large-M / large-Ntot variant
    # should tile the ConstrainLoss columns and the Sinkhorn batch over a grid.
    print("KERNEL_OK")
</pallas_src>

<mosaic_0001>
module attributes {stable_mosaic.version = 11 : i64} {
  func.func @fused_kernel(%arg0: memref<4x16x4xf32, #tpu.memory_space<vmem>>, %arg1: memref<4x4x16xf32, #tpu.memory_space<vmem>>, %arg2: memref<2x32xf32, #tpu.memory_space<vmem>>, %arg3: memref<3xf32, #tpu.memory_space<smem>>) attributes {dimension_semantics = [], scalar_prefetch = 0 : i64, scratch_operands = 0 : i64, tpu.core_type = #tpu.core_type<tc>} {
    %c0 = arith.constant 0 : index
    %c0_0 = arith.constant 0 : index
    %c0_1 = arith.constant 0 : index
    %0 = vector.load %arg0[%c0, %c0_0, %c0_1] : memref<4x16x4xf32, #tpu.memory_space<vmem>>, vector<4x16x4xf32>
    %c0_2 = arith.constant 0 : index
    %c0_3 = arith.constant 0 : index
    %c0_4 = arith.constant 0 : index
    %1 = vector.load %arg1[%c0_2, %c0_3, %c0_4] : memref<4x4x16xf32, #tpu.memory_space<vmem>>, vector<4x4x16xf32>
    %c0_5 = arith.constant 0 : index
    %c0_6 = arith.constant 0 : index
    %2 = vector.load %arg2[%c0_5, %c0_6] : memref<2x32xf32, #tpu.memory_space<vmem>>, vector<2x32xf32>
    %cst = arith.constant 0.000000e+00 : f32
    %3 = vector.broadcast %cst : f32 to vector<4x16x32xf32>
    %4 = vector.extract_strided_slice %0 {offsets = [0, 0, 0], sizes = [4, 16, 1], strides = [1, 1, 1]} : vector<4x16x4xf32> to vector<4x16x1xf32>
    %5 = vector.extract_strided_slice %2 {offsets = [0, 0], sizes = [1, 32], strides = [1, 1]} : vector<2x32xf32> to vector<1x32xf32>
    %6 = vector.shape_cast %5 : vector<1x32xf32> to vector<1x1x32xf32>
    %7 = vector.broadcast %4 : vector<4x16x1xf32> to vector<4x16x32xf32>
    %8 = vector.broadcast %6 : vector<1x1x32xf32> to vector<4x16x32xf32>
    %9 = arith.subf %7, %8 : vector<4x16x32xf32>
    %10 = arith.mulf %9, %9 : vector<4x16x32xf32>
    %11 = arith.addf %3, %10 : vector<4x16x32xf32>
    %12 = vector.extract_strided_slice %0 {offsets = [0, 0, 1], sizes = [4, 16, 1], strides = [1, 1, 1]} : vector<4x16x4xf32> to vector<4x16x1xf32>
    %13 = vector.extract_strided_slice %2 {offsets = [1, 0], sizes = [1, 32], strides = [1, 1]} : vector<2x32xf32> to vector<1x32xf32>
    %14 = vector.shape_cast %13 : vector<1x32xf32> to vector<1x1x32xf32>
    %15 = vector.broadcast %12 : vector<4x16x1xf32> to vector<4x16x32xf32>
    %16 = vector.broadcast %14 : vector<1x1x32xf32> to vector<4x16x32xf32>
    %17 = arith.subf %15, %16 : vector<4x16x32xf32>
    %18 = arith.mulf %17, %17 : vector<4x16x32xf32>
    %19 = arith.addf %11, %18 : vector<4x16x32xf32>
    %cst_7 = arith.constant 0.000000e+00 : f32
    %20 = vector.broadcast %cst_7 : f32 to vector<4x16x32xf32>
    %21 = arith.subf %20, %19 : vector<4x16x32xf32>
    %cst_8 = arith.constant 5.000000e-01 : f32
    %22 = vector.broadcast %cst_8 : f32 to vector<4x16x32xf32>
    %23 = arith.divf %21, %22 : vector<4x16x32xf32>
    %cst_9 = arith.constant -3.46573591 : f32
    %24 = vector.broadcast %cst_9 : f32 to vector<4x16x32xf32>
    %25 = arith.addf %23, %24 : vector<4x16x32xf32>
    %cst_10 = arith.constant dense<0xFF800000> : vector<4x16xf32>
    %26 = vector.multi_reduction <maximumf>, %25, %cst_10 [2] : vector<4x16x32xf32> to vector<4x16xf32>
    %27 = vector.shape_cast %26 : vector<4x16xf32> to vector<4x16x1xf32>
    %28 = vector.broadcast %27 : vector<4x16x1xf32> to vector<4x16x32xf32>
    %29 = arith.subf %25, %28 : vector<4x16x32xf32>
    %30 = math.exp %29 : vector<4x16x32xf32>
    %cst_11 = arith.constant dense<0.000000e+00> : vector<4x16xf32>
    %31 = vector.multi_reduction <add>, %30, %cst_11 [2] : vector<4x16x32xf32> to vector<4x16xf32>
    %32 = vector.shape_cast %31 : vector<4x16xf32> to vector<4x16x1xf32>
    %33 = math.log %32 : vector<4x16x1xf32>
    %34 = arith.addf %27, %33 : vector<4x16x1xf32>
    %35 = vector.shape_cast %34 : vector<4x16x1xf32> to vector<1x4x16x1xf32>
    %cst_12 = arith.constant dense<0.000000e+00> : vector<1xf32>
    %36 = vector.multi_reduction <add>, %35, %cst_12 [1, 2, 3] : vector<1x4x16x1xf32> to vector<1xf32>
    %37 = vector.shape_cast %36 : vector<1xf32> to vector<1x1x1x1xf32>
    %38 = vector.extract %37[0, 0, 0, 0] : f32 from vector<1x1x1x1xf32>
    %39 = vector.extract_strided_slice %19 {offsets = [0, 0, 0], sizes = [1, 16, 8], strides = [1, 1, 1]} : vector<4x16x32xf32> to vector<1x16x8xf32>
    %40 = vector.shape_cast %39 : vector<1x16x8xf32> to vector<16x8xf32>
    %cst_13 = arith.constant 0.000000e+00 : f32
    %41 = vector.broadcast %cst_13 : f32 to vector<16x8xf32>
    %42 = arith.subf %41, %40 : vector<16x8xf32>
    %cst_14 = arith.constant 5.000000e-01 : f32
    %43 = vector.broadcast %cst_14 : f32 to vector<16x8xf32>
    %44 = arith.divf %42, %43 : vector<16x8xf32>
    %cst_15 = arith.constant -2.77258873 : f32
    %45 = vector.broadcast %cst_15 : f32 to vector<16x8xf32>
    %46 = arith.addf %44, %45 : vector<16x8xf32>
    %cst_16 = arith.constant dense<0xFF800000> : vector<8xf32>
    %47 = vector.multi_reduction <maximumf>, %46, %cst_16 [0] : vector<16x8xf32> to vector<8xf32>
    %48 = vector.shape_cast %47 : vector<8xf32> to vector<1x8xf32>
    %49 = vector.broadcast %48 : vector<1x8xf32> to vector<16x8xf32>
    %50 = arith.subf %46, %49 : vector<16x8xf32>
    %51 = math.exp %50 : vector<16x8xf32>
    %cst_17 = arith.constant dense<0.000000e+00> : vector<8xf32>
    %52 = vector.multi_reduction <add>, %51, %cst_17 [0] : vector<16x8xf32> to vector<8xf32>
    %53 = vector.shape_cast %52 : vector<8xf32> to vector<1x8xf32>
    %54 = math.log %53 : vector<1x8xf32>
    %55 = arith.addf %48, %54 : vector<1x8xf32>
    %56 = vector.shape_cast %55 : vector<1x8xf32> to vector<1x1x8xf32>
    %cst_18 = arith.constant dense<0.000000e+00> : vector<1xf32>
    %57 = vector.multi_reduction <add>, %56, %cst_18 [1, 2] : vector<1x1x8xf32> to vector<1xf32>
    %58 = vector.shape_cast %57 : vector<1xf32> to vector<1x1x1xf32>
    %59 = vector.extract %58[0, 0, 0] : f32 from vector<1x1x1xf32>
    %cst_19 = arith.constant 0.000000e+00 : f32
    %60 = arith.addf %cst_19, %59 : f32
    %61 = vector.extract_strided_slice %19 {offsets = [1, 0, 8], sizes = [1, 16, 8], strides = [1, 1, 1]} : vector<4x16x32xf32> to vector<1x16x8xf32>
    %62 = vector.shape_cast %61 : vector<1x16x8xf32> to vector<16x8xf32>
    %cst_20 = arith.constant 0.000000e+00 : f32
    %63 = vector.broadcast %cst_20 : f32 to vector<16x8xf32>
    %64 = arith.subf %63, %62 : vector<16x8xf32>
    %cst_21 = arith.constant 5.000000e-01 : f32
    %65 = vector.broadcast %cst_21 : f32 to vector<16x8xf32>
    %66 = arith.divf %64, %65 : vector<16x8xf32>
    %cst_22 = arith.constant -2.77258873 : f32
    %67 = vector.broadcast %cst_22 : f32 to vector<16x8xf32>
    %68 = arith.addf %66, %67 : vector<16x8xf32>
    %cst_23 = arith.constant dense<0xFF800000> : vector<8xf32>
    %69 = vector.multi_reduction <maximumf>, %68, %cst_23 [0] : vector<16x8xf32> to vector<8xf32>
    %70 = vector.shape_cast %69 : vector<8xf32> to vector<1x8xf32>
    %71 = vector.broadcast %70 : vector<1x8xf32> to vector<16x8xf32>
    %72 = arith.subf %68, %71 : vector<16x8xf32>
    %73 = math.exp %72 : vector<16x8xf32>
    %cst_24 = arith.constant dense<0.000000e+00> : vector<8xf32>
    %74 = vector.multi_reduction <add>, %73, %cst_24 [0] : vector<16x8xf32> to vector<8xf32>
    %75 = vector.shape_cast %74 : vector<8xf32> to vector<1x8xf32>
    %76 = math.log %75 : vector<1x8xf32>
    %77 = arith.addf %70, %76 : vector<1x8xf32>
    %78 = vector.shape_cast %77 : vector<1x8xf32> to vector<1x1x8xf32>
    %cst_25 = arith.constant dense<0.000000e+00> : vector<1xf32>
    %79 = vector.multi_reduction <add>, %78, %cst_25 [1, 2] : vector<1x1x8xf32> to vector<1xf32>
    %80 = vector.shape_cast %79 : vector<1xf32> to vector<1x1x1xf32>
    %81 = vector.extract %80[0, 0, 0] : f32 from vector<1x1x1xf32>
    %82 = arith.addf %60, %81 : f32
    %83 = vector.extract_strided_slice %19 {offsets = [2, 0, 16], sizes = [1, 16, 8], strides = [1, 1, 1]} : vector<4x16x32xf32> to vector<1x16x8xf32>
    %84 = vector.shape_cast %83 : vector<1x16x8xf32> to vector<16x8xf32>
    %cst_26 = arith.constant 0.000000e+00 : f32
    %85 = vector.broadcast %cst_26 : f32 to vector<16x8xf32>
    %86 = arith.subf %85, %84 : vector<16x8xf32>
    %cst_27 = arith.constant 5.000000e-01 : f32
    %87 = vector.broadcast %cst_27 : f32 to vector<16x8xf32>
    %88 = arith.divf %86, %87 : vector<16x8xf32>
    %cst_28 = arith.constant -2.77258873 : f32
    %89 = vector.broadcast %cst_28 : f32 to vector<16x8xf32>
    %90 = arith.addf %88, %89 : vector<16x8xf32>
    %cst_29 = arith.constant dense<0xFF800000> : vector<8xf32>
    %91 = vector.multi_reduction <maximumf>, %90, %cst_29 [0] : vector<16x8xf32> to vector<8xf32>
    %92 = vector.shape_cast %91 : vector<8xf32> to vector<1x8xf32>
    %93 = vector.broadcast %92 : vector<1x8xf32> to vector<16x8xf32>
    %94 = arith.subf %90, %93 : vector<16x8xf32>
    %95 = math.exp %94 : vector<16x8xf32>
    %cst_30 = arith.constant dense<0.000000e+00> : vector<8xf32>
    %96 = vector.multi_reduction <add>, %95, %cst_30 [0] : vector<16x8xf32> to vector<8xf32>
    %97 = vector.shape_cast %96 : vector<8xf32> to vector<1x8xf32>
    %98 = math.log %97 : vector<1x8xf32>
    %99 = arith.addf %92, %98 : vector<1x8xf32>
    %100 = vector.shape_cast %99 : vector<1x8xf32> to vector<1x1x8xf32>
    %cst_31 = arith.constant dense<0.000000e+00> : vector<1xf32>
    %101 = vector.multi_reduction <add>, %100, %cst_31 [1, 2] : vector<1x1x8xf32> to vector<1xf32>
    %102 = vector.shape_cast %101 : vector<1xf32> to vector<1x1x1xf32>
    %103 = vector.extract %102[0, 0, 0] : f32 from vector<1x1x1xf32>
    %104 = arith.addf %82, %103 : f32
    %105 = vector.extract_strided_slice %19 {offsets = [3, 0, 24], sizes = [1, 16, 8], strides = [1, 1, 1]} : vector<4x16x32xf32> to vector<1x16x8xf32>
    %106 = vector.shape_cast %105 : vector<1x16x8xf32> to vector<16x8xf32>
    %cst_32 = arith.constant 0.000000e+00 : f32
    %107 = vector.broadcast %cst_32 : f32 to vector<16x8xf32>
    %108 = arith.subf %107, %106 : vector<16x8xf32>
    %cst_33 = arith.constant 5.000000e-01 : f32
    %109 = vector.broadcast %cst_33 : f32 to vector<16x8xf32>
    %110 = arith.divf %108, %109 : vector<16x8xf32>
    %cst_34 = arith.constant -2.77258873 : f32
    %111 = vector.broadcast %cst_34 : f32 to vector<16x8xf32>
    %112 = arith.addf %110, %111 : vector<16x8xf32>
    %cst_35 = arith.constant dense<0xFF800000> : vector<8xf32>
    %113 = vector.multi_reduction <maximumf>, %112, %cst_35 [0] : vector<16x8xf32> to vector<8xf32>
    %114 = vector.shape_cast %113 : vector<8xf32> to vector<1x8xf32>
    %115 = vector.broadcast %114 : vector<1x8xf32> to vector<16x8xf32>
    %116 = arith.subf %112, %115 : vector<16x8xf32>
    %117 = math.exp %116 : vector<16x8xf32>
    %cst_36 = arith.constant dense<0.000000e+00> : vector<8xf32>
    %118 = vector.multi_reduction <add>, %117, %cst_36 [0] : vector<16x8xf32> to vector<8xf32>
    %119 = vector.shape_cast %118 : vector<8xf32> to vector<1x8xf32>
    %120 = math.log %119 : vector<1x8xf32>
    %121 = arith.addf %114, %120 : vector<1x8xf32>
    %122 = vector.shape_cast %121 : vector<1x8xf32> to vector<1x1x8xf32>
    %cst_37 = arith.constant dense<0.000000e+00> : vector<1xf32>
    %123 = vector.multi_reduction <add>, %122, %cst_37 [1, 2] : vector<1x1x8xf32> to vector<1xf32>
    %124 = vector.shape_cast %123 : vector<1xf32> to vector<1x1x1xf32>
    %125 = vector.extract %124[0, 0, 0] : f32 from vector<1x1x1xf32>
    %126 = arith.addf %104, %125 : f32
    %c1 = arith.constant 1 : index
    %127 = memref.load %arg3[%c1] : memref<3xf32, #tpu.memory_space<smem>>
    memref.store %126, %arg3[%c1] : memref<3xf32, #tpu.memory_space<smem>>
    %c2 = arith.constant 2 : index
    %128 = memref.load %arg3[%c2] : memref<3xf32, #tpu.memory_space<smem>>
    memref.store %38, %arg3[%c2] : memref<3xf32, #tpu.memory_space<smem>>
    %cst_38 = arith.constant 0.000000e+00 : f32
    %129 = vector.broadcast %cst_38 : f32 to vector<3x16x16xf32>
    %130 = vector.extract_strided_slice %0 {offsets = [0, 0, 0], sizes = [3, 16, 1], strides = [1, 1, 1]} : vector<4x16x4xf32> to vector<3x16x1xf32>
    %131 = vector.extract_strided_slice %1 {offsets = [1, 0, 0], sizes = [3, 1, 16], strides = [1, 1, 1]} : vector<4x4x16xf32> to vector<3x1x16xf32>
    %132 = vector.broadcast %130 : vector<3x16x1xf32> to vector<3x16x16xf32>
    %133 = vector.broadcast %131 : vector<3x1x16xf32> to vector<3x16x16xf32>
    %134 = arith.subf %132, %133 : vector<3x16x16xf32>
    %135 = arith.mulf %134, %134 : vector<3x16x16xf32>
    %136 = arith.addf %129, %135 : vector<3x16x16xf32>
    %137 = vector.extract_strided_slice %0 {offsets = [0, 0, 1], sizes = [3, 16, 1], strides = [1, 1, 1]} : vector<4x16x4xf32> to vector<3x16x1xf32>
    %138 = vector.extract_strided_slice %1 {offsets = [1, 1, 0], sizes = [3, 1, 16], strides = [1, 1, 1]} : vector<4x4x16xf32> to vector<3x1x16xf32>
    %139 = vector.broadcast %137 : vector<3x16x1xf32> to vector<3x16x16xf32>
    %140 = vector.broadcast %138 : vector<3x1x16xf32> to vector<3x16x16xf32>
    %141 = arith.subf %139, %140 : vector<3x16x16xf32>
    %142 = arith.mulf %141, %141 : vector<3x16x16xf32>
    %143 = arith.addf %136, %142 : vector<3x16x16xf32>
    %144 = vector.extract_strided_slice %0 {offsets = [0, 0, 2], sizes = [3, 16, 1], strides = [1, 1, 1]} : vector<4x16x4xf32> to vector<3x16x1xf32>
    %145 = vector.extract_strided_slice %1 {offsets = [1, 2, 0], sizes = [3, 1, 16], strides = [1, 1, 1]} : vector<4x4x16xf32> to vector<3x1x16xf32>
    %146 = vector.broadcast %144 : vector<3x16x1xf32> to vector<3x16x16xf32>
    %147 = vector.broadcast %145 : vector<3x1x16xf32> to vector<3x16x16xf32>
    %148 = arith.subf %146, %147 : vector<3x16x16xf32>
    %149 = arith.mulf %148, %148 : vector<3x16x16xf32>
    %150 = arith.addf %143, %149 : vector<3x16x16xf32>
    %151 = vector.extract_strided_slice %0 {offsets = [0, 0, 3], sizes = [3, 16, 1], strides = [1, 1, 1]} : vector<4x16x4xf32> to vector<3x16x1xf32>
    %152 = vector.extract_strided_slice %1 {offsets = [1, 3, 0], sizes = [3, 1, 16], strides = [1, 1, 1]} : vector<4x4x16xf32> to vector<3x1x16xf32>
    %153 = vector.broadcast %151 : vector<3x16x1xf32> to vector<3x16x16xf32>
    %154 = vector.broadcast %152 : vector<3x1x16xf32> to vector<3x16x16xf32>
    %155 = arith.subf %153, %154 : vector<3x16x16xf32>
    %156 = arith.mulf %155, %155 : vector<3x16x16xf32>
    %157 = arith.addf %150, %156 : vector<3x16x16xf32>
    %cst_39 = arith.constant 5.000000e-01 : f32
    %158 = vector.broadcast %cst_39 : f32 to vector<3x16x16xf32>
    %159 = arith.mulf %158, %157 : vector<3x16x16xf32>
    %cst_40 = arith.constant 0.000000e+00 : f32
    %160 = vector.broadcast %cst_40 : f32 to vector<3x16x1xf32>
    %cst_41 = arith.constant 0.000000e+00 : f32
    %161 = vector.broadcast %cst_41 : f32 to vector<3x1x16xf32>
    %162 = vector.broadcast %160 : vector<3x16x1xf32> to vector<3x16x16xf32>
    %163 = arith.addf %159, %162 : vector<3x16x16xf32>
    %164 = vector.broadcast %161 : vector<3x1x16xf32> to vector<3x16x16xf32>
    %165 = arith.addf %163, %164 : vector<3x16x16xf32>
    %cst_42 = arith.constant 0.000000e+00 : f32
    %166 = vector.broadcast %cst_42 : f32 to vector<3x16x16xf32>
    %167 = arith.subf %166, %165 : vector<3x16x16xf32>
    %cst_43 = arith.constant 1.000000e+00 : f32
    %168 = vector.broadcast %cst_43 : f32 to vector<3x16x16xf32>
    %169 = arith.divf %167, %168 : vector<3x16x16xf32>
    %cst_44 = arith.constant 3.67575407 : f32
    %170 = vector.broadcast %cst_44 : f32 to vector<3x16x16xf32>
    %171 = arith.subf %169, %170 : vector<3x16x16xf32>
    %cst_45 = arith.constant -5.54517746 : f32
    %172 = vector.broadcast %cst_45 : f32 to vector<3x16x16xf32>
    %173 = arith.addf %171, %172 : vector<3x16x16xf32>
    %174 = math.exp %173 : vector<3x16x16xf32>
    %cst_46 = arith.constant dense<0.000000e+00> : vector<3x16xf32>
    %175 = vector.multi_reduction <add>, %174, %cst_46 [1] : vector<3x16x16xf32> to vector<3x16xf32>
    %176 = vector.shape_cast %175 : vector<3x16xf32> to vector<3x1x16xf32>
    %cst_47 = arith.constant 1.000000e+00 : f32
    %177 = vector.broadcast %cst_47 : f32 to vector<3x16x1xf32>
    %cst_48 = arith.constant 1.000000e+00 : f32
    %178 = vector.broadcast %cst_48 : f32 to vector<3x1x16xf32>
    %cst_49 = arith.constant 0.000000e+00 : f32
    %179 = vector.broadcast %cst_49 : f32 to vector<3x1x1xf32>
    %c0_i32 = arith.constant 0 : i32
    %cst_50 = arith.constant 0.000000e+00 : f32
    %180:8 = scf.while (%arg4 = %c0_i32, %arg5 = %177, %arg6 = %178, %arg7 = %160, %arg8 = %161, %arg9 = %176, %arg10 = %179, %arg11 = %cst_50) : (i32, vector<3x16x1xf32>, vector<3x1x16xf32>, vector<3x16x1xf32>, vector<3x1x16xf32>, vector<3x1x16xf32>, vector<3x1x1xf32>, f32) -> (i32, vector<3x16x1xf32>, vector<3x1x16xf32>, vector<3x16x1xf32>, vector<3x1x16xf32>, vector<3x1x16xf32>, vector<3x1x1xf32>, f32) {
      %c20_i32 = arith.constant 20 : i32
      %262 = arith.cmpi slt, %arg4, %c20_i32 : i32
      %cst_78 = arith.constant 5.000000e-01 : f32
      %263 = arith.cmpf olt, %arg11, %cst_78 : f32
      %264 = arith.andi %262, %263 : i1
      scf.condition(%264) %arg4, %arg5, %arg6, %arg7, %arg8, %arg9, %arg10, %arg11 : i32, vector<3x16x1xf32>, vector<3x1x16xf32>, vector<3x16x1xf32>, vector<3x1x16xf32>, vector<3x1x16xf32>, vector<3x1x1xf32>, f32
    } do {
    ^bb0(%arg4: i32, %arg5: vector<3x16x1xf32>, %arg6: vector<3x1x16xf32>, %arg7: vector<3x16x1xf32>, %arg8: vector<3x1x16xf32>, %arg9: vector<3x1x16xf32>, %arg10: vector<3x1x1xf32>, %arg11: f32):
      %262 = vector.broadcast %arg7 : vector<3x16x1xf32> to vector<3x16x16xf32>
      %263 = arith.addf %159, %262 : vector<3x16x16xf32>
      %264 = vector.broadcast %arg8 : vector<3x1x16xf32> to vector<3x16x16xf32>
      %265 = arith.addf %263, %264 : vector<3x16x16xf32>
      %cst_78 = arith.constant 0.000000e+00 : f32
      %266 = vector.broadcast %cst_78 : f32 to vector<3x16x16xf32>
      %267 = arith.subf %266, %265 : vector<3x16x16xf32>
      %cst_79 = arith.constant 1.000000e+00 : f32
      %268 = vector.broadcast %cst_79 : f32 to vector<3x16x16xf32>
      %269 = arith.divf %267, %268 : vector<3x16x16xf32>
      %cst_80 = arith.constant 3.67575407 : f32
      %270 = vector.broadcast %cst_80 : f32 to vector<3x16x16xf32>
      %271 = arith.subf %269, %270 : vector<3x16x16xf32>
      %cst_81 = arith.constant -5.54517746 : f32
      %272 = vector.broadcast %cst_81 : f32 to vector<3x16x16xf32>
      %273 = arith.addf %271, %272 : vector<3x16x16xf32>
      %274 = math.exp %273 : vector<3x16x16xf32>
      %cst_82 = arith.constant 6.250000e-02 : f32
      %275 = vector.broadcast %cst_82 : f32 to vector<3x1x16xf32>
      %276 = arith.divf %275, %arg9 : vector<3x1x16xf32>
      %277 = vector.broadcast %276 : vector<3x1x16xf32> to vector<3x16x16xf32>
      %278 = arith.mulf %274, %277 : vector<3x16x16xf32>
      %cst_83 = arith.constant dense<0.000000e+00> : vector<3x16xf32>
      %279 = vector.multi_reduction <add>, %278, %cst_83 [2] : vector<3x16x16xf32> to vector<3x16xf32>
      %280 = vector.shape_cast %279 : vector<3x16xf32> to vector<3x16x1xf32>
      %cst_84 = arith.constant 6.250000e-02 : f32
      %281 = vector.broadcast %cst_84 : f32 to vector<3x16x1xf32>
      %282 = arith.divf %281, %280 : vector<3x16x1xf32>
      %283 = vector.broadcast %282 : vector<3x16x1xf32> to vector<3x16x16xf32>
      %284 = arith.mulf %274, %283 : vector<3x16x16xf32>
      %cst_85 = arith.constant dense<0.000000e+00> : vector<3x16xf32>
      %285 = vector.multi_reduction <add>, %284, %cst_85 [1] : vector<3x16x16xf32> to vector<3x16xf32>
      %286 = vector.shape_cast %285 : vector<3x16xf32> to vector<3x1x16xf32>
      %287 = arith.mulf %276, %286 : vector<3x1x16xf32>
      %cst_86 = arith.constant 6.250000e-02 : f32
      %288 = vector.broadcast %cst_86 : f32 to vector<3x1x16xf32>
      %289 = arith.subf %287, %288 : vector<3x1x16xf32>
      %290 = math.absf %289 : vector<3x1x16xf32>
      %cst_87 = arith.constant dense<0xFF800000> : vector<3x1xf32>
      %291 = vector.multi_reduction <maximumf>, %290, %cst_87 [2] : vector<3x1x16xf32> to vector<3x1xf32>
      %292 = vector.shape_cast %291 : vector<3x1xf32> to vector<3x1x1xf32>
      %cst_88 = arith.constant 9.99999974E-5 : f32
      %293 = vector.broadcast %cst_88 : f32 to vector<3x1x1xf32>
      %294 = arith.cmpf olt, %292, %293 : vector<3x1x1xf32>
      %cst_89 = arith.constant 1.600000e+01 : f32
      %295 = vector.broadcast %cst_89 : f32 to vector<3x1x1xf32>
      %296 = arith.mulf %292, %295 : vector<3x1x1xf32>
      %cst_90 = arith.constant 9.99999974E-5 : f32
      %297 = vector.broadcast %cst_90 : f32 to vector<3x1x1xf32>
      %298 = arith.cmpf olt, %296, %297 : vector<3x1x1xf32>
      %299 = arith.ori %294, %298 : vector<3x1x1xi1>
      %300 = math.absf %282 : vector<3x16x1xf32>
      %cst_91 = arith.constant dense<0xFF800000> : vector<3x1xf32>
      %301 = vector.multi_reduction <maximumf>, %300, %cst_91 [1] : vector<3x16x1xf32> to vector<3x1xf32>
      %302 = vector.shape_cast %301 : vector<3x1xf32> to vector<3x1x1xf32>
      %303 = math.absf %276 : vector<3x1x16xf32>
      %cst_92 = arith.constant dense<0xFF800000> : vector<3x1xf32>
      %304 = vector.multi_reduction <maximumf>, %303, %cst_92 [2] : vector<3x1x16xf32> to vector<3x1xf32>
      %305 = vector.shape_cast %304 : vector<3x1xf32> to vector<3x1x1xf32>
      %306 = arith.maximumf %302, %305 : vector<3x1x1xf32>
      %cst_93 = arith.constant 1.000000e+02 : f32
      %307 = vector.broadcast %cst_93 : f32 to vector<3x1x1xf32>
      %308 = arith.cmpf ogt, %306, %307 : vector<3x1x1xf32>
      %cst_94 = arith.constant dense<true> : vector<3x1x1xi1>
      %309 = arith.xori %299, %cst_94 : vector<3x1x1xi1>
      %310 = arith.andi %308, %309 : vector<3x1x1xi1>
      %311 = math.log %282 : vector<3x16x1xf32>
      %cst_95 = arith.constant 1.000000e+00 : f32
      %312 = vector.broadcast %cst_95 : f32 to vector<3x16x1xf32>
      %313 = arith.mulf %312, %311 : vector<3x16x1xf32>
      %314 = arith.subf %arg7, %313 : vector<3x16x1xf32>
      %315 = vector.shape_cast %310 : vector<3x1x1xi1> to vector<3x1x1xi1>
      %316 = vector.broadcast %315 : vector<3x1x1xi1> to vector<3x16x1xi1>
      %317 = arith.select %316, %314, %arg7 : vector<3x16x1xi1>, vector<3x16x1xf32>
      %318 = math.log %276 : vector<3x1x16xf32>
      %cst_96 = arith.constant 1.000000e+00 : f32
      %319 = vector.broadcast %cst_96 : f32 to vector<3x1x16xf32>
      %320 = arith.mulf %319, %318 : vector<3x1x16xf32>
      %321 = arith.subf %arg8, %320 : vector<3x1x16xf32>
      %322 = vector.shape_cast %310 : vector<3x1x1xi1> to vector<3x1x1xi1>
      %323 = vector.broadcast %322 : vector<3x1x1xi1> to vector<3x1x16xi1>
      %324 = arith.select %323, %321, %arg8 : vector<3x1x16xi1>, vector<3x1x16xf32>
      %cst_97 = arith.constant 1.000000e+00 : f32
      %325 = vector.shape_cast %310 : vector<3x1x1xi1> to vector<3x1x1xi1>
      %326 = vector.broadcast %325 : vector<3x1x1xi1> to vector<3x16x1xi1>
      %327 = vector.broadcast %cst_97 : f32 to vector<3x16x1xf32>
      %328 = arith.select %326, %327, %282 : vector<3x16x1xi1>, vector<3x16x1xf32>
      %cst_98 = arith.constant 1.000000e+00 : f32
      %329 = vector.shape_cast %310 : vector<3x1x1xi1> to vector<3x1x1xi1>
      %330 = vector.broadcast %329 : vector<3x1x1xi1> to vector<3x1x16xi1>
      %331 = vector.broadcast %cst_98 : f32 to vector<3x1x16xf32>
      %332 = arith.select %330, %331, %276 : vector<3x1x16xi1>, vector<3x1x16xf32>
      %333 = arith.mulf %286, %276 : vector<3x1x16xf32>
      %334 = vector.shape_cast %310 : vector<3x1x1xi1> to vector<3x1x1xi1>
      %335 = vector.broadcast %334 : vector<3x1x1xi1> to vector<3x1x16xi1>
      %336 = arith.select %335, %333, %286 : vector<3x1x16xi1>, vector<3x1x16xf32>
      %cst_99 = arith.constant 5.000000e-01 : f32
      %337 = vector.broadcast %cst_99 : f32 to vector<3x1x1xf32>
      %338 = arith.cmpf olt, %arg10, %337 : vector<3x1x1xf32>
      %339 = arith.extui %299 : vector<3x1x1xi1> to vector<3x1x1xi32>
      %340 = arith.sitofp %339 : vector<3x1x1xi32> to vector<3x1x1xf32>
      %341 = arith.maximumf %arg10, %340 : vector<3x1x1xf32>
      %342 = vector.shape_cast %341 : vector<3x1x1xf32> to vector<1x3x1x1xf32>
      %cst_100 = arith.constant dense<0x7F800000> : vector<1xf32>
      %343 = vector.multi_reduction <minimumf>, %342, %cst_100 [1, 2, 3] : vector<1x3x1x1xf32> to vector<1xf32>
      %344 = vector.shape_cast %343 : vector<1xf32> to vector<1x1x1x1xf32>
      %345 = vector.extract %344[0, 0, 0, 0] : f32 from vector<1x1x1x1xf32>
      %c1_i32 = arith.constant 1 : i32
      %346 = arith.addi %arg4, %c1_i32 : i32
      %347 = vector.shape_cast %338 : vector<3x1x1xi1> to vector<3x1x1xi1>
      %348 = vector.broadcast %347 : vector<3x1x1xi1> to vector<3x16x1xi1>
      %349 = arith.select %348, %328, %arg5 : vector<3x16x1xi1>, vector<3x16x1xf32>
      %350 = vector.shape_cast %338 : vector<3x1x1xi1> to vector<3x1x1xi1>
      %351 = vector.broadcast %350 : vector<3x1x1xi1> to vector<3x1x16xi1>
      %352 = arith.select %351, %332, %arg6 : vector<3x1x16xi1>, vector<3x1x16xf32>
      %353 = vector.shape_cast %338 : vector<3x1x1xi1> to vector<3x1x1xi1>
      %354 = vector.broadcast %353 : vector<3x1x1xi1> to vector<3x16x1xi1>
      %355 = arith.select %354, %317, %arg7 : vector<3x16x1xi1>, vector<3x16x1xf32>
      %356 = vector.shape_cast %338 : vector<3x1x1xi1> to vector<3x1x1xi1>
      %357 = vector.broadcast %356 : vector<3x1x1xi1> to vector<3x1x16xi1>
      %358 = arith.select %357, %324, %arg8 : vector<3x1x16xi1>, vector<3x1x16xf32>
      %359 = vector.shape_cast %338 : vector<3x1x1xi1> to vector<3x1x1xi1>
      %360 = vector.broadcast %359 : vector<3x1x1xi1> to vector<3x1x16xi1>
      %361 = arith.select %360, %336, %arg9 : vector<3x1x16xi1>, vector<3x1x16xf32>
      scf.yield %346, %349, %352, %355, %358, %361, %341, %345 : i32, vector<3x16x1xf32>, vector<3x1x16xf32>, vector<3x16x1xf32>, vector<3x1x16xf32>, vector<3x1x16xf32>, vector<3x1x1xf32>, f32
    }
    %181 = math.log %180#1 : vector<3x16x1xf32>
    %cst_51 = arith.constant -1.000000e+00 : f32
    %182 = vector.broadcast %cst_51 : f32 to vector<3x16x1xf32>
    %183 = arith.mulf %182, %181 : vector<3x16x1xf32>
    %184 = arith.addf %183, %180#3 : vector<3x16x1xf32>
    %185 = math.log %180#2 : vector<3x1x16xf32>
    %cst_52 = arith.constant -1.000000e+00 : f32
    %186 = vector.broadcast %cst_52 : f32 to vector<3x1x16xf32>
    %187 = arith.mulf %186, %185 : vector<3x1x16xf32>
    %188 = arith.addf %187, %180#4 : vector<3x1x16xf32>
    %cst_53 = arith.constant 0.000000e+00 : f32
    %189 = vector.broadcast %cst_53 : f32 to vector<3x16x16xf32>
    %190 = arith.subf %189, %159 : vector<3x16x16xf32>
    %191 = vector.broadcast %188 : vector<3x1x16xf32> to vector<3x16x16xf32>
    %192 = arith.subf %190, %191 : vector<3x16x16xf32>
    %cst_54 = arith.constant 1.000000e+00 : f32
    %193 = vector.broadcast %cst_54 : f32 to vector<3x16x16xf32>
    %194 = arith.divf %192, %193 : vector<3x16x16xf32>
    %cst_55 = arith.constant -2.77258873 : f32
    %195 = vector.broadcast %cst_55 : f32 to vector<3x16x16xf32>
    %196 = arith.addf %194, %195 : vector<3x16x16xf32>
    %cst_56 = arith.constant dense<0xFF800000> : vector<3x16xf32>
    %197 = vector.multi_reduction <maximumf>, %196, %cst_56 [2] : vector<3x16x16xf32> to vector<3x16xf32>
    %198 = vector.shape_cast %197 : vector<3x16xf32> to vector<3x16x1xf32>
    %199 = vector.broadcast %198 : vector<3x16x1xf32> to vector<3x16x16xf32>
    %200 = arith.subf %196, %199 : vector<3x16x16xf32>
    %201 = math.exp %200 : vector<3x16x16xf32>
    %cst_57 = arith.constant dense<0.000000e+00> : vector<3x16xf32>
    %202 = vector.multi_reduction <add>, %201, %cst_57 [2] : vector<3x16x16xf32> to vector<3x16xf32>
    %203 = vector.shape_cast %202 : vector<3x16xf32> to vector<3x16x1xf32>
    %204 = math.log %203 : vector<3x16x1xf32>
    %205 = arith.addf %198, %204 : vector<3x16x1xf32>
    %cst_58 = arith.constant 1.000000e+00 : f32
    %206 = vector.broadcast %cst_58 : f32 to vector<3x16x1xf32>
    %207 = arith.mulf %206, %205 : vector<3x16x1xf32>
    %cst_59 = arith.constant 3.67575407 : f32
    %208 = vector.broadcast %cst_59 : f32 to vector<3x16x1xf32>
    %209 = arith.subf %207, %208 : vector<3x16x1xf32>
    %cst_60 = arith.constant 0.000000e+00 : f32
    %210 = vector.broadcast %cst_60 : f32 to vector<3x16x16xf32>
    %211 = arith.subf %210, %159 : vector<3x16x16xf32>
    %212 = vector.broadcast %184 : vector<3x16x1xf32> to vector<3x16x16xf32>
    %213 = arith.subf %211, %212 : vector<3x16x16xf32>
    %cst_61 = arith.constant 1.000000e+00 : f32
    %214 = vector.broadcast %cst_61 : f32 to vector<3x16x16xf32>
    %215 = arith.divf %213, %214 : vector<3x16x16xf32>
    %cst_62 = arith.constant -2.77258873 : f32
    %216 = vector.broadcast %cst_62 : f32 to vector<3x16x16xf32>
    %217 = arith.addf %215, %216 : vector<3x16x16xf32>
    %cst_63 = arith.constant dense<0xFF800000> : vector<3x16xf32>
    %218 = vector.multi_reduction <maximumf>, %217, %cst_63 [1] : vector<3x16x16xf32> to vector<3x16xf32>
    %219 = vector.shape_cast %218 : vector<3x16xf32> to vector<3x1x16xf32>
    %220 = vector.broadcast %219 : vector<3x1x16xf32> to vector<3x16x16xf32>
    %221 = arith.subf %217, %220 : vector<3x16x16xf32>
    %222 = math.exp %221 : vector<3x16x16xf32>
    %cst_64 = arith.constant dense<0.000000e+00> : vector<3x16xf32>
    %223 = vector.multi_reduction <add>, %222, %cst_64 [1] : vector<3x16x16xf32> to vector<3x16xf32>
    %224 = vector.shape_cast %223 : vector<3x16xf32> to vector<3x1x16xf32>
    %225 = math.log %224 : vector<3x1x16xf32>
    %226 = arith.addf %219, %225 : vector<3x1x16xf32>
    %cst_65 = arith.constant 1.000000e+00 : f32
    %227 = vector.broadcast %cst_65 : f32 to vector<3x1x16xf32>
    %228 = arith.mulf %227, %226 : vector<3x1x16xf32>
    %cst_66 = arith.constant 3.67575407 : f32
    %229 = vector.broadcast %cst_66 : f32 to vector<3x1x16xf32>
    %230 = arith.subf %228, %229 : vector<3x1x16xf32>
    %231 = vector.broadcast %209 : vector<3x16x1xf32> to vector<3x16x16xf32>
    %232 = arith.addf %159, %231 : vector<3x16x16xf32>
    %233 = vector.broadcast %230 : vector<3x1x16xf32> to vector<3x16x16xf32>
    %234 = arith.addf %232, %233 : vector<3x16x16xf32>
    %cst_67 = arith.constant 0.000000e+00 : f32
    %235 = vector.broadcast %cst_67 : f32 to vector<3x16x16xf32>
    %236 = arith.subf %235, %234 : vector<3x16x16xf32>
    %cst_68 = arith.constant 1.000000e+00 : f32
    %237 = vector.broadcast %cst_68 : f32 to vector<3x16x16xf32>
    %238 = arith.divf %236, %237 : vector<3x16x16xf32>
    %cst_69 = arith.constant 3.67575407 : f32
    %239 = vector.broadcast %cst_69 : f32 to vector<3x16x16xf32>
    %240 = arith.subf %238, %239 : vector<3x16x16xf32>
    %cst_70 = arith.constant -5.54517746 : f32
    %241 = vector.broadcast %cst_70 : f32 to vector<3x16x16xf32>
    %242 = arith.addf %240, %241 : vector<3x16x16xf32>
    %243 = math.exp %242 : vector<3x16x16xf32>
    %244 = vector.shape_cast %209 : vector<3x16x1xf32> to vector<1x3x16x1xf32>
    %cst_71 = arith.constant dense<0.000000e+00> : vector<1xf32>
    %245 = vector.multi_reduction <add>, %244, %cst_71 [1, 2, 3] : vector<1x3x16x1xf32> to vector<1xf32>
    %246 = vector.shape_cast %245 : vector<1xf32> to vector<1x1x1x1xf32>
    %247 = vector.extract %246[0, 0, 0, 0] : f32 from vector<1x1x1x1xf32>
    %248 = vector.shape_cast %230 : vector<3x1x16xf32> to vector<1x3x1x16xf32>
    %cst_72 = arith.constant dense<0.000000e+00> : vector<1xf32>
    %249 = vector.multi_reduction <add>, %248, %cst_72 [1, 2, 3] : vector<1x3x1x16xf32> to vector<1xf32>
    %250 = vector.shape_cast %249 : vector<1xf32> to vector<1x1x1x1xf32>
    %251 = vector.extract %250[0, 0, 0, 0] : f32 from vector<1x1x1x1xf32>
    %252 = arith.addf %247, %251 : f32
    %cst_73 = arith.constant 0.000000e+00 : f32
    %253 = arith.subf %cst_73, %252 : f32
    %cst_74 = arith.constant 6.250000e-02 : f32
    %254 = arith.mulf %253, %cst_74 : f32
    %255 = vector.shape_cast %243 : vector<3x16x16xf32> to vector<1x3x16x16xf32>
    %cst_75 = arith.constant dense<0.000000e+00> : vector<1xf32>
    %256 = vector.multi_reduction <add>, %255, %cst_75 [1, 2, 3] : vector<1x3x16x16xf32> to vector<1xf32>
    %257 = vector.shape_cast %256 : vector<1xf32> to vector<1x1x1x1xf32>
    %258 = vector.extract %257[0, 0, 0, 0] : f32 from vector<1x1x1x1xf32>
    %cst_76 = arith.constant 1.000000e+00 : f32
    %259 = arith.mulf %cst_76, %258 : f32
    %260 = arith.subf %254, %259 : f32
    %c0_77 = arith.constant 0 : index
    %261 = memref.load %arg3[%c0_77] : memref<3xf32, #tpu.memory_space<smem>>
    memref.store %260, %arg3[%c0_77] : memref<3xf32, #tpu.memory_space<smem>>
    return
  }
}

</mosaic_0001>

<llo_original>
// kernel: traj_loss_forward.1
$region0: #{traj_loss_forward.1}
  #allocation0 [shape = 'u32[]', space=smem, size = 0x4, offset = 0x4, fixed_abs, tag = 'smem constant byte address 0x4 - core index']
  #allocation1 [shape = 'u32[72,128]{1,0:T(1,128)}', space=vmem, size = 0x9000, scoped, tag = 'internal scratch']
  %s0 = inlined_call_operand.vmem [shape: f32[4,16,4], index: 0, kind: input, shape index: {}]
  %s1 = inlined_call_operand.vmem [shape: f32[4,4,16], index: 1, kind: input, shape index: {}]
  %s2 = inlined_call_operand.vmem [shape: f32[2,32], index: 2, kind: input, shape index: {}]
  %s3 = inlined_call_operand.vmem [shape: f32[3], index: 3, kind: output, shape index: {}]
  %s4 = sld [smem:[#allocation0]]
  $region29: #{traj_loss_forward.1} parent=0
    _
  %s6 = ssub.s32 1, %s4
  %s7 = scalar_select 0, %s6, %s4
  $region1: #{traj_loss_forward.1} parent=0
    #allocation2 [shape = 'u8[512]{0}', space=smem, size = 0x200, scoped, tag = 'output window, operand 0, single buffered']
    #allocation3 [shape = 's32[1]{0}', space=sflag, size = 0x4, scoped, tag = 'scoped memory for traj_loss_forward.1']
    %8 = vsyncpa [#allocation3], 0
    // Predicated region
    $region2: #{traj_loss_forward.1} parent=1 // pred_check
      _
    $region3: #{traj_loss_forward.1} parent=1 // pred_check_branch
      %10 = sbr.rel (0) target = $region5
    $region4: #{traj_loss_forward.1} parent=1 // pred_region
      _
    $region5: #{traj_loss_forward.1} parent=1 // pred_fallthru
      _
    // Predicated region
    $region6: #{traj_loss_forward.1} parent=1 // pred_check
      _
    $region7: #{traj_loss_forward.1} parent=1 // pred_check_branch
      %12 = sbr.rel (0) target = $region9
    $region8: #{traj_loss_forward.1} parent=1 // pred_region
      _
    $region9: #{traj_loss_forward.1} parent=1 // pred_fallthru
      _
    // Predicated region
    $region10: #{traj_loss_forward.1} parent=1 // pred_check
      _
    $region11: #{traj_loss_forward.1} parent=1 // pred_check_branch
      %14 = sbr.rel (0) target = $region13
    $region12: #{traj_loss_forward.1} parent=1 // pred_region
      _
    $region13: #{traj_loss_forward.1} parent=1 // pred_fallthru
      _
    %v15 = vld [vmem:[%s0] sm:$0xff]
    %v16 = vld [vmem:[%s0 + $0x8] sm:$0xff]
    %v17 = vld [vmem:[%s0 + $0x10] sm:$0xff]
    %v18 = vld [vmem:[%s0 + $0x18] sm:$0xff]
    %v19 = vld [vmem:[%s0 + $0x20] sm:$0xff]
    %v20 = vld [vmem:[%s0 + $0x28] sm:$0xff]
    %v21 = vld [vmem:[%s0 + $0x30] sm:$0xff]
    %v22 = vld [vmem:[%s0 + $0x38] sm:$0xff]
    %v23 = vld [vmem:[%s1 + $0x4] sm:$0xf]
    %v24 = vld [vmem:[%s1 + $0x8] sm:$0xf]
    %v25 = vld [vmem:[%s1 + $0xc] sm:$0xf]
    %v26 = vld [vmem:[%s2] sm:$0x3]
    %28 = vset.pattern.permute.xlu0 0
    %29 = vperm.xlu0 %28, %v15
    %v30 = vpop.permute.xlu0 %29
    %33 = vset.pattern.permute.xlu0 0
    %34 = vperm.xlu0 %33, %v16
    %v35 = vpop.permute.xlu0 %34
    %38 = vset.pattern.permute.xlu0 0
    %39 = vperm.xlu0 %38, %v17
    %v40 = vpop.permute.xlu0 %39
    %43 = vset.pattern.permute.xlu0 0
    %44 = vperm.xlu0 %43, %v18
    %v45 = vpop.permute.xlu0 %44
    %48 = vset.pattern.permute.xlu0 0
    %49 = vperm.xlu0 %48, %v19
    %v50 = vpop.permute.xlu0 %49
    %53 = vset.pattern.permute.xlu0 0
    %54 = vperm.xlu0 %53, %v20
    %v55 = vpop.permute.xlu0 %54
    %58 = vset.pattern.permute.xlu0 0
    %59 = vperm.xlu0 %58, %v21
    %v60 = vpop.permute.xlu0 %59
    %63 = vset.pattern.permute.xlu0 0
    %64 = vperm.xlu0 %63, %v22
    %v65 = vpop.permute.xlu0 %64
    %v67 = vperm.slane %v26, 0
    %v68 = vsub.f32 %v30, %v67
    %v69 = vsub.f32 %v35, %v67
    %v70 = vsub.f32 %v40, %v67
    %v71 = vsub.f32 %v45, %v67
    %v72 = vsub.f32 %v50, %v67
    %v73 = vsub.f32 %v55, %v67
    %v74 = vsub.f32 %v60, %v67
    %v75 = vsub.f32 %v65, %v67
    %v76 = vmul.f32 %v68, %v68
    %v77 = vmul.f32 %v69, %v69
    %v78 = vmul.f32 %v70, %v70
    %v79 = vmul.f32 %v71, %v71
    %v80 = vmul.f32 %v72, %v72
    %v81 = vmul.f32 %v73, %v73
    %v82 = vmul.f32 %v74, %v74
    %v83 = vmul.f32 %v75, %v75
    %v84 = vadd.f32 %v76, 0.0
    %v85 = vadd.f32 %v77, 0.0
    %v86 = vadd.f32 %v78, 0.0
    %v87 = vadd.f32 %v79, 0.0
    %v88 = vadd.f32 %v80, 0.0
    %v89 = vadd.f32 %v81, 0.0
    %v90 = vadd.f32 %v82, 0.0
    %v91 = vadd.f32 %v83, 0.0
    %92 = vset.pattern.permute.xlu0 1
    %93 = vperm.xlu0 %92, %v15
    %v94 = vpop.permute.xlu0 %93
    %96 = vset.pattern.permute.xlu0 1
    %97 = vperm.xlu0 %96, %v16
    %v98 = vpop.permute.xlu0 %97
    %100 = vset.pattern.permute.xlu0 1
    %101 = vperm.xlu0 %100, %v17
    %v102 = vpop.permute.xlu0 %101
    %104 = vset.pattern.permute.xlu0 1
    %105 = vperm.xlu0 %104, %v18
    %v106 = vpop.permute.xlu0 %105
    %108 = vset.pattern.permute.xlu0 1
    %109 = vperm.xlu0 %108, %v19
    %v110 = vpop.permute.xlu0 %109
    %112 = vset.pattern.permute.xlu0 1
    %113 = vperm.xlu0 %112, %v20
    %v114 = vpop.permute.xlu0 %113
    %116 = vset.pattern.permute.xlu0 1
    %117 = vperm.xlu0 %116, %v21
    %v118 = vpop.permute.xlu0 %117
    %120 = vset.pattern.permute.xlu0 1
    %121 = vperm.xlu0 %120, %v22
    %v122 = vpop.permute.xlu0 %121
    %v124 = vperm.slane %v26, 1
    %v125 = vsub.f32 %v94, %v124
    %v126 = vsub.f32 %v98, %v124
    %v127 = vsub.f32 %v102, %v124
    %v128 = vsub.f32 %v106, %v124
    %v129 = vsub.f32 %v110, %v124
    %v130 = vsub.f32 %v114, %v124
    %v131 = vsub.f32 %v118, %v124
    %v132 = vsub.f32 %v122, %v124
    %v133 = vmul.f32 %v125, %v125
    %v134 = vmul.f32 %v126, %v126
    %v135 = vmul.f32 %v127, %v127
    %v136 = vmul.f32 %v128, %v128
    %v137 = vmul.f32 %v129, %v129
    %v138 = vmul.f32 %v130, %v130
    %v139 = vmul.f32 %v131, %v131
    %v140 = vmul.f32 %v132, %v132
    %v141 = vadd.f32 %v84, %v133
    %v142 = vadd.f32 %v85, %v134
    %v143 = vadd.f32 %v86, %v135
    %v144 = vadd.f32 %v87, %v136
    %v145 = vadd.f32 %v88, %v137
    %v146 = vadd.f32 %v89, %v138
    %v147 = vadd.f32 %v90, %v139
    %v148 = vadd.f32 %v91, %v140
    %v149 = vsub.f32 0.0, %v141
    %v150 = vsub.f32 0.0, %v142
    %v151 = vsub.f32 0.0, %v143
    %v152 = vsub.f32 0.0, %v144
    %v153 = vsub.f32 0.0, %v145
    %v154 = vsub.f32 0.0, %v146
    %v155 = vsub.f32 0.0, %v147
    %v156 = vsub.f32 0.0, %v148
    %v157 = vrcp.pop 0.5
    %v158 = vmul.f32 0.5, %v157
    %v159 = vsub.f32 1.0, %v158
    %v160 = vmul.f32 %v157, %v159
    %v161 = vadd.f32 %v157, %v160
    %vm162 = vweird.f32 %v157
    %v163 = vsel %vm162, %v157, %v161
    %v164 = vmul.f32 %v149, %v163
    %v165 = vmul.f32 %v150, %v163
    %v166 = vmul.f32 %v151, %v163
    %v167 = vmul.f32 %v152, %v163
    %v168 = vmul.f32 %v153, %v163
    %v169 = vmul.f32 %v154, %v163
    %v170 = vmul.f32 %v155, %v163
    %v171 = vmul.f32 %v156, %v163
    %v172 = vadd.f32 %v164, -3.465736
    %v173 = vadd.f32 %v165, -3.465736
    %v174 = vadd.f32 %v166, -3.465736
    %v175 = vadd.f32 %v167, -3.465736
    %v176 = vadd.f32 %v168, -3.465736
    %v177 = vadd.f32 %v169, -3.465736
    %v178 = vadd.f32 %v170, -3.465736
    %v179 = vadd.f32 %v171, -3.465736
    %vm180 = vcmask 261120
    %v181 = vsel %vm180, %v172, -inf
    %182 = vmax.xlane.f32.xlu0 %v181
    %v183 = vpop.xlane.xlu0 %182
    %v184 = vsel %vm180, %v173, -inf
    %185 = vmax.xlane.f32.xlu0 %v184
    %v186 = vpop.xlane.xlu0 %185
    %v187 = vsel %vm180, %v174, -inf
    %188 = vmax.xlane.f32.xlu0 %v187
    %v189 = vpop.xlane.xlu0 %188
    %v190 = vsel %vm180, %v175, -inf
    %191 = vmax.xlane.f32.xlu0 %v190
    %v192 = vpop.xlane.xlu0 %191
    %v193 = vsel %vm180, %v176, -inf
    %194 = vmax.xlane.f32.xlu0 %v193
    %v195 = vpop.xlane.xlu0 %194
    %v196 = vsel %vm180, %v177, -inf
    %197 = vmax.xlane.f32.xlu0 %v196
    %v198 = vpop.xlane.xlu0 %197
    %v199 = vsel %vm180, %v178, -inf
    %200 = vmax.xlane.f32.xlu0 %v199
    %v201 = vpop.xlane.xlu0 %200
    %v202 = vsel %vm180, %v179, -inf
    %203 = vmax.xlane.f32.xlu0 %v202
    %v204 = vpop.xlane.xlu0 %203
    %v205 = vsub.f32 %v172, %v183
    %v206 = vsub.f32 %v173, %v186
    %v207 = vsub.f32 %v174, %v189
    %v208 = vsub.f32 %v175, %v192
    %v209 = vsub.f32 %v176, %v195
    %v210 = vsub.f32 %v177, %v198
    %v211 = vsub.f32 %v178, %v201
    %v212 = vsub.f32 %v179, %v204
    %v213 = vmul.f32 %v205, 1.442695
    %v214 = vpow.pop %v213
    %v215 = vmul.f32 %v206, 1.442695
    %v216 = vpow.pop %v215
    %v217 = vmul.f32 %v207, 1.442695
    %v218 = vpow.pop %v217
    %v219 = vmul.f32 %v208, 1.442695
    %v220 = vpow.pop %v219
    %v221 = vmul.f32 %v209, 1.442695
    %v222 = vpow.pop %v221
    %v223 = vmul.f32 %v210, 1.442695
    %v224 = vpow.pop %v223
    %v225 = vmul.f32 %v211, 1.442695
    %v226 = vpow.pop %v225
    %v227 = vmul.f32 %v212, 1.442695
    %v228 = vpow.pop %v227
    %v229 = vsel %vm180, %v214, 0.0
    %230 = vadd.xlane.f32.xlu0 %v229
    %v231 = vpop.xlane.xlu0 %230
    %v232 = vsel %vm180, %v216, 0.0
    %233 = vadd.xlane.f32.xlu0 %v232
    %v234 = vpop.xlane.xlu0 %233
    %v235 = vsel %vm180, %v218, 0.0
    %236 = vadd.xlane.f32.xlu0 %v235
    %v237 = vpop.xlane.xlu0 %236
    %v238 = vsel %vm180, %v220, 0.0
    %239 = vadd.xlane.f32.xlu0 %v238
    %v240 = vpop.xlane.xlu0 %239
    %v241 = vsel %vm180, %v222, 0.0
    %242 = vadd.xlane.f32.xlu0 %v241
    %v243 = vpop.xlane.xlu0 %242
    %v244 = vsel %vm180, %v224, 0.0
    %245 = vadd.xlane.f32.xlu0 %v244
    %v246 = vpop.xlane.xlu0 %245
    %v247 = vsel %vm180, %v226, 0.0
    %248 = vadd.xlane.f32.xlu0 %v247
    %v249 = vpop.xlane.xlu0 %248
    %v250 = vsel %vm180, %v228, 0.0
    %251 = vadd.xlane.f32.xlu0 %v250
    %v252 = vpop.xlane.xlu0 %251
    %v253 = vlog2.pop %v231
    %v254 = vmul.f32 %v253, 0.6931472
    %v255 = vlog2.pop %v234
    %v256 = vmul.f32 %v255, 0.6931472
    %v257 = vlog2.pop %v237
    %v258 = vmul.f32 %v257, 0.6931472
    %v259 = vlog2.pop %v240
    %v260 = vmul.f32 %v259, 0.6931472
    %v261 = vlog2.pop %v243
    %v262 = vmul.f32 %v261, 0.6931472
    %v263 = vlog2.pop %v246
    %v264 = vmul.f32 %v263, 0.6931472
    %v265 = vlog2.pop %v249
    %v266 = vmul.f32 %v265, 0.6931472
    %v267 = vlog2.pop %v252
    %v268 = vmul.f32 %v267, 0.6931472
    %v269 = vadd.f32 %v183, %v254
    %v270 = vadd.f32 %v186, %v256
    %v271 = vadd.f32 %v189, %v258
    %v272 = vadd.f32 %v192, %v260
    %v273 = vadd.f32 %v195, %v262
    %v274 = vadd.f32 %v198, %v264
    %v275 = vadd.f32 %v201, %v266
    %v276 = vadd.f32 %v204, %v268
    %vm277 = vcmask 7168
    %v278 = vsel %vm277, %v269, 0.0
    %v279 = vsel %vm277, %v270, 0.0
    %v280 = vadd.f32 %v278, %v279
    %v281 = vsel %vm277, %v271, 0.0
    %v282 = vadd.f32 %v280, %v281
    %v283 = vsel %vm277, %v272, 0.0
    %v284 = vadd.f32 %v282, %v283
    %v285 = vsel %vm277, %v273, 0.0
    %v286 = vadd.f32 %v284, %v285
    %v287 = vsel %vm277, %v274, 0.0
    %v288 = vadd.f32 %v286, %v287
    %v289 = vsel %vm277, %v275, 0.0
    %v290 = vadd.f32 %v288, %v289
    %v291 = vsel %vm277, %v276, 0.0
    %v292 = vadd.f32 %v290, %v291
    %293 = vadd.xlane.f32.xlu0 %v292
    %v294 = vpop.xlane.xlu0 %293
    %v295 = vrot.slane %v294, 4
    %v296 = vadd.f32 %v294, %v295
    %v297 = vrot.slane %v296, 2
    %v298 = vadd.f32 %v296, %v297
    %v299 = vrot.slane %v298, 1
    %v300 = vadd.f32 %v298, %v299
    %s301 = vtos %v300
    %v302 = vadd.f32 %v164, -2.7725887
    %v303 = vadd.f32 %v165, -2.7725887
    %vm304 = vcmask 64512
    %v305 = vsel %vm304, %v302, -inf
    %v306 = vsel %vm304, %v303, -inf
    %v307 = vmax.f32 %v305, %v306
    %v308 = vrot.slane %v307, 4
    %v309 = vmax.f32 %v307, %v308
    %v310 = vrot.slane %v309, 2
    %v311 = vmax.f32 %v309, %v310
    %v312 = vrot.slane %v311, 1
    %v313 = vmax.f32 %v311, %v312
    %v314 = vsub.f32 %v302, %v313
    %v315 = vsub.f32 %v303, %v313
    %v316 = vmul.f32 %v314, 1.442695
    %v317 = vpow.pop %v316
    %v318 = vmul.f32 %v315, 1.442695
    %v319 = vpow.pop %v318
    %v320 = vsel %vm304, %v317, 0.0
    %v321 = vsel %vm304, %v319, 0.0
    %v322 = vadd.f32 %v320, %v321
    %v323 = vrot.slane %v322, 4
    %v324 = vadd.f32 %v322, %v323
    %v325 = vrot.slane %v324, 2
    %v326 = vadd.f32 %v324, %v325
    %v327 = vrot.slane %v326, 1
    %v328 = vadd.f32 %v326, %v327
    %v329 = vlog2.pop %v328
    %v330 = vmul.f32 %v329, 0.6931472
    %v331 = vadd.f32 %v313, %v330
    %vm332 = vcmask 57344
    %v333 = vsel %vm332, %v331, 0.0
    %334 = vadd.xlane.f32.xlu0 %v333
    %v335 = vpop.xlane.xlu0 %334
    %v336 = vrot.slane %v335, 4
    %v337 = vadd.f32 %v335, %v336
    %v338 = vrot.slane %v337, 2
    %v339 = vadd.f32 %v337, %v338
    %v340 = vrot.slane %v339, 1
    %v341 = vadd.f32 %v339, %v340
    %s342 = vtos %v341
    %s343 = sadd.f32 %s342, 0.0
    %v344 = vadd.f32 %v166, -2.7725887
    %v345 = vadd.f32 %v167, -2.7725887
    %vm346 = vcmask 130112
    %v347 = vsel %vm346, %v344, -inf
    %v348 = vsel %vm346, %v345, -inf
    %v349 = vmax.f32 %v347, %v348
    %v350 = vrot.slane %v349, 4
    %v351 = vmax.f32 %v349, %v350
    %v352 = vrot.slane %v351, 2
    %v353 = vmax.f32 %v351, %v352
    %v354 = vrot.slane %v353, 1
    %v355 = vmax.f32 %v353, %v354
    %v356 = vsub.f32 %v344, %v355
    %v357 = vsub.f32 %v345, %v355
    %v358 = vmul.f32 %v356, 1.442695
    %v359 = vpow.pop %v358
    %v360 = vmul.f32 %v357, 1.442695
    %v361 = vpow.pop %v360
    %v362 = vsel %vm346, %v359, 0.0
    %v363 = vsel %vm346, %v361, 0.0
    %v364 = vadd.f32 %v362, %v363
    %v365 = vrot.slane %v364, 4
    %v366 = vadd.f32 %v364, %v365
    %v367 = vrot.slane %v366, 2
    %v368 = vadd.f32 %v366, %v367
    %v369 = vrot.slane %v368, 1
    %v370 = vadd.f32 %v368, %v369
    %v371 = vlog2.pop %v370
    %v372 = vmul.f32 %v371, 0.6931472
    %v373 = vadd.f32 %v355, %v372
    %375 = vrot.lane.b32.xlu0 %v373, 120
    %v376 = vpop.permute.xlu0 %375
    %v378 = vsel %vm332, %v376, 0.0
    %379 = vadd.xlane.f32.xlu0 %v378
    %v380 = vpop.xlane.xlu0 %379
    %v381 = vrot.slane %v380, 4
    %v382 = vadd.f32 %v380, %v381
    %v383 = vrot.slane %v382, 2
    %v384 = vadd.f32 %v382, %v383
    %v385 = vrot.slane %v384, 1
    %v386 = vadd.f32 %v384, %v385
    %s387 = vtos %v386
    %s388 = sadd.f32 %s343, %s387
    %v389 = vadd.f32 %v168, -2.7725887
    %v390 = vadd.f32 %v169, -2.7725887
    %vm391 = vcmask 195712
    %v392 = vsel %vm391, %v389, -inf
    %v393 = vsel %vm391, %v390, -inf
    %v394 = vmax.f32 %v392, %v393
    %v395 = vrot.slane %v394, 4
    %v396 = vmax.f32 %v394, %v395
    %v397 = vrot.slane %v396, 2
    %v398 = vmax.f32 %v396, %v397
    %v399 = vrot.slane %v398, 1
    %v400 = vmax.f32 %v398, %v399
    %v401 = vsub.f32 %v389, %v400
    %v402 = vsub.f32 %v390, %v400
    %v403 = vmul.f32 %v401, 1.442695
    %v404 = vpow.pop %v403
    %v405 = vmul.f32 %v402, 1.442695
    %v406 = vpow.pop %v405
    %v407 = vsel %vm391, %v404, 0.0
    %v408 = vsel %vm391, %v406, 0.0
    %v409 = vadd.f32 %v407, %v408
    %v410 = vrot.slane %v409, 4
    %v411 = vadd.f32 %v409, %v410
    %v412 = vrot.slane %v411, 2
    %v413 = vadd.f32 %v411, %v412
    %v414 = vrot.slane %v413, 1
    %v415 = vadd.f32 %v413, %v414
    %v416 = vlog2.pop %v415
    %v417 = vmul.f32 %v416, 0.6931472
    %v418 = vadd.f32 %v400, %v417
    %420 = vrot.lane.b32.xlu0 %v418, 112
    %v421 = vpop.permute.xlu0 %420
    %v423 = vsel %vm332, %v421, 0.0
    %424 = vadd.xlane.f32.xlu0 %v423
    %v425 = vpop.xlane.xlu0 %424
    %v426 = vrot.slane %v425, 4
    %v427 = vadd.f32 %v425, %v426
    %v428 = vrot.slane %v427, 2
    %v429 = vadd.f32 %v427, %v428
    %v430 = vrot.slane %v429, 1
    %v431 = vadd.f32 %v429, %v430
    %s432 = vtos %v431
    %s433 = sadd.f32 %s388, %s432
    %v434 = vadd.f32 %v170, -2.7725887
    %v435 = vadd.f32 %v171, -2.7725887
    %vm436 = vcmask 261312
    %v437 = vsel %vm436, %v434, -inf
    %v438 = vsel %vm436, %v435, -inf
    %v439 = vmax.f32 %v437, %v438
    %v440 = vrot.slane %v439, 4
    %v441 = vmax.f32 %v439, %v440
    %v442 = vrot.slane %v441, 2
    %v443 = vmax.f32 %v441, %v442
    %v444 = vrot.slane %v443, 1
    %v445 = vmax.f32 %v443, %v444
    %v446 = vsub.f32 %v434, %v445
    %v447 = vsub.f32 %v435, %v445
    %v448 = vmul.f32 %v446, 1.442695
    %v449 = vpow.pop %v448
    %v450 = vmul.f32 %v447, 1.442695
    %v451 = vpow.pop %v450
    %v452 = vsel %vm436, %v449, 0.0
    %v453 = vsel %vm436, %v451, 0.0
    %v454 = vadd.f32 %v452, %v453
    %v455 = vrot.slane %v454, 4
    %v456 = vadd.f32 %v454, %v455
    %v457 = vrot.slane %v456, 2
    %v458 = vadd.f32 %v456, %v457
    %v459 = vrot.slane %v458, 1
    %v460 = vadd.f32 %v458, %v459
    %v461 = vlog2.pop %v460
    %v462 = vmul.f32 %v461, 0.6931472
    %v463 = vadd.f32 %v445, %v462
    %465 = vrot.lane.b32.xlu0 %v463, 104
    %v466 = vpop.permute.xlu0 %465
    %v468 = vsel %vm332, %v466, 0.0
    %469 = vadd.xlane.f32.xlu0 %v468
    %v470 = vpop.xlane.xlu0 %469
    %v471 = vrot.slane %v470, 4
    %v472 = vadd.f32 %v470, %v471
    %v473 = vrot.slane %v472, 2
    %v474 = vadd.f32 %v472, %v473
    %v475 = vrot.slane %v474, 1
    %v476 = vadd.f32 %v474, %v475
    %s477 = vtos %v476
    %s478 = sadd.f32 %s433, %s477
    %s479 = scalar_lea.smem [#allocation2], 1
    %480 = sst [smem:[%s479]] %s478
    %s481 = scalar_lea.smem [#allocation2], 2
    %482 = sst [smem:[%s481]] %s301
    %v483 = vperm.slane %v23, 0
    %v484 = vperm.slane %v24, 0
    %v485 = vperm.slane %v25, 0
    %v486 = vsub.f32 %v30, %v483
    %v487 = vsub.f32 %v35, %v483
    %v488 = vsub.f32 %v40, %v484
    %v489 = vsub.f32 %v45, %v484
    %v490 = vsub.f32 %v50, %v485
    %v491 = vsub.f32 %v55, %v485
    %v492 = vmul.f32 %v486, %v486
    %v493 = vmul.f32 %v487, %v487
    %v494 = vmul.f32 %v488, %v488
    %v495 = vmul.f32 %v489, %v489
    %v496 = vmul.f32 %v490, %v490
    %v497 = vmul.f32 %v491, %v491
    %v498 = vadd.f32 %v492, 0.0
    %v499 = vadd.f32 %v493, 0.0
    %v500 = vadd.f32 %v494, 0.0
    %v501 = vadd.f32 %v495, 0.0
    %v502 = vadd.f32 %v496, 0.0
    %v503 = vadd.f32 %v497, 0.0
    %v504 = vperm.slane %v23, 1
    %v505 = vperm.slane %v24, 1
    %v506 = vperm.slane %v25, 1
    %v507 = vsub.f32 %v94, %v504
    %v508 = vsub.f32 %v98, %v504
    %v509 = vsub.f32 %v102, %v505
    %v510 = vsub.f32 %v106, %v505
    %v511 = vsub.f32 %v110, %v506
    %v512 = vsub.f32 %v114, %v506
    %v513 = vmul.f32 %v507, %v507
    %v514 = vmul.f32 %v508, %v508
    %v515 = vmul.f32 %v509, %v509
    %v516 = vmul.f32 %v510, %v510
    %v517 = vmul.f32 %v511, %v511
    %v518 = vmul.f32 %v512, %v512
    %v519 = vadd.f32 %v498, %v513
    %v520 = vadd.f32 %v499, %v514
    %v521 = vadd.f32 %v500, %v515
    %v522 = vadd.f32 %v501, %v516
    %v523 = vadd.f32 %v502, %v517
    %v524 = vadd.f32 %v503, %v518
    %525 = vset.pattern.permute.xlu0 2
    %526 = vperm.xlu0 %525, %v15
    %v527 = vpop.permute.xlu0 %526
    %529 = vset.pattern.permute.xlu0 2
    %530 = vperm.xlu0 %529, %v16
    %v531 = vpop.permute.xlu0 %530
    %533 = vset.pattern.permute.xlu0 2
    %534 = vperm.xlu0 %533, %v17
    %v535 = vpop.permute.xlu0 %534
    %537 = vset.pattern.permute.xlu0 2
    %538 = vperm.xlu0 %537, %v18
    %v539 = vpop.permute.xlu0 %538
    %541 = vset.pattern.permute.xlu0 2
    %542 = vperm.xlu0 %541, %v19
    %v543 = vpop.permute.xlu0 %542
    %545 = vset.pattern.permute.xlu0 2
    %546 = vperm.xlu0 %545, %v20
    %v547 = vpop.permute.xlu0 %546
    %v549 = vperm.slane %v23, 2
    %v550 = vperm.slane %v24, 2
    %v551 = vperm.slane %v25, 2
    %v552 = vsub.f32 %v527, %v549
    %v553 = vsub.f32 %v531, %v549
    %v554 = vsub.f32 %v535, %v550
    %v555 = vsub.f32 %v539, %v550
    %v556 = vsub.f32 %v543, %v551
    %v557 = vsub.f32 %v547, %v551
    %v558 = vmul.f32 %v552, %v552
    %v559 = vmul.f32 %v553, %v553
    %v560 = vmul.f32 %v554, %v554
    %v561 = vmul.f32 %v555, %v555
    %v562 = vmul.f32 %v556, %v556
    %v563 = vmul.f32 %v557, %v557
    %v564 = vadd.f32 %v519, %v558
    %v565 = vadd.f32 %v520, %v559
    %v566 = vadd.f32 %v521, %v560
    %v567 = vadd.f32 %v522, %v561
    %v568 = vadd.f32 %v523, %v562
    %v569 = vadd.f32 %v524, %v563
    %570 = vset.pattern.permute.xlu0 3
    %571 = vperm.xlu0 %570, %v15
    %v572 = vpop.permute.xlu0 %571
    %574 = vset.pattern.permute.xlu0 3
    %575 = vperm.xlu0 %574, %v16
    %v576 = vpop.permute.xlu0 %575
    %578 = vset.pattern.permute.xlu0 3
    %579 = vperm.xlu0 %578, %v17
    %v580 = vpop.permute.xlu0 %579
    %582 = vset.pattern.permute.xlu0 3
    %583 = vperm.xlu0 %582, %v18
    %v584 = vpop.permute.xlu0 %583
    %586 = vset.pattern.permute.xlu0 3
    %587 = vperm.xlu0 %586, %v19
    %v588 = vpop.permute.xlu0 %587
    %590 = vset.pattern.permute.xlu0 3
    %591 = vperm.xlu0 %590, %v20
    %v592 = vpop.permute.xlu0 %591
    %v594 = vperm.slane %v23, 3
    %v595 = vperm.slane %v24, 3
    %v596 = vperm.slane %v25, 3
    %v597 = vsub.f32 %v572, %v594
    %v598 = vsub.f32 %v576, %v594
    %v599 = vsub.f32 %v580, %v595
    %v600 = vsub.f32 %v584, %v595
    %v601 = vsub.f32 %v588, %v596
    %v602 = vsub.f32 %v592, %v596
    %v603 = vmul.f32 %v597, %v597
    %v604 = vmul.f32 %v598, %v598
    %v605 = vmul.f32 %v599, %v599
    %v606 = vmul.f32 %v600, %v600
    %v607 = vmul.f32 %v601, %v601
    %v608 = vmul.f32 %v602, %v602
    %v609 = vadd.f32 %v564, %v603
    %v610 = vadd.f32 %v565, %v604
    %v611 = vadd.f32 %v566, %v605
    %v612 = vadd.f32 %v567, %v606
    %v613 = vadd.f32 %v568, %v607
    %v614 = vadd.f32 %v569, %v608
    %v615 = vmul.f32 %v609, 0.5
    %v616 = vmul.f32 %v610, 0.5
    %v617 = vmul.f32 %v611, 0.5
    %v618 = vmul.f32 %v612, 0.5
    %v619 = vmul.f32 %v613, 0.5
    %v620 = vmul.f32 %v614, 0.5
    %v621 = vadd.f32 %v615, 0.0
    %v622 = vadd.f32 %v616, 0.0
    %v623 = vadd.f32 %v617, 0.0
    %v624 = vadd.f32 %v618, 0.0
    %v625 = vadd.f32 %v619, 0.0
    %v626 = vadd.f32 %v620, 0.0
    %v627 = vadd.f32 %v621, 0.0
    %v628 = vadd.f32 %v622, 0.0
    %v629 = vadd.f32 %v623, 0.0
    %v630 = vadd.f32 %v624, 0.0
    %v631 = vadd.f32 %v625, 0.0
    %v632 = vadd.f32 %v626, 0.0
    %v633 = vsub.f32 0.0, %v627
    %v634 = vsub.f32 0.0, %v628
    %v635 = vsub.f32 0.0, %v629
    %v636 = vsub.f32 0.0, %v630
    %v637 = vsub.f32 0.0, %v631
    %v638 = vsub.f32 0.0, %v632
    %v639 = vsub.f32 %v633, 3.675754
    %v640 = vsub.f32 %v634, 3.675754
    %v641 = vsub.f32 %v635, 3.675754
    %v642 = vsub.f32 %v636, 3.675754
    %v643 = vsub.f32 %v637, 3.675754
    %v644 = vsub.f32 %v638, 3.675754
    %v645 = vadd.f32 %v639, -5.5451775
    %v646 = vadd.f32 %v640, -5.5451775
    %v647 = vadd.f32 %v641, -5.5451775
    %v648 = vadd.f32 %v642, -5.5451775
    %v649 = vadd.f32 %v643, -5.5451775
    %v650 = vadd.f32 %v644, -5.5451775
    %v651 = vmul.f32 %v645, 1.442695
    %v652 = vpow.pop %v651
    %v653 = vmul.f32 %v646, 1.442695
    %v654 = vpow.pop %v653
    %v655 = vmul.f32 %v647, 1.442695
    %v656 = vpow.pop %v655
    %v657 = vmul.f32 %v648, 1.442695
    %v658 = vpow.pop %v657
    %v659 = vmul.f32 %v649, 1.442695
    %v660 = vpow.pop %v659
    %v661 = vmul.f32 %v650, 1.442695
    %v662 = vpow.pop %v661
    %vm663 = vcmask 130048
    %v664 = vsel %vm663, %v652, 0.0
    %v665 = vsel %vm663, %v654, 0.0
    %v666 = vadd.f32 %v664, %v665
    %v667 = vrot.slane %v666, 4
    %v668 = vadd.f32 %v666, %v667
    %v669 = vrot.slane %v668, 2
    %v670 = vadd.f32 %v668, %v669
    %v671 = vrot.slane %v670, 1
    %v672 = vadd.f32 %v670, %v671
    %v673 = vsel %vm663, %v656, 0.0
    %v674 = vsel %vm663, %v658, 0.0
    %v675 = vadd.f32 %v673, %v674
    %v676 = vrot.slane %v675, 4
    %v677 = vadd.f32 %v675, %v676
    %v678 = vrot.slane %v677, 2
    %v679 = vadd.f32 %v677, %v678
    %v680 = vrot.slane %v679, 1
    %v681 = vadd.f32 %v679, %v680
    %v682 = vsel %vm663, %v660, 0.0
    %v683 = vsel %vm663, %v662, 0.0
    %v684 = vadd.f32 %v682, %v683
    %v685 = vrot.slane %v684, 4
    %v686 = vadd.f32 %v684, %v685
    %v687 = vrot.slane %v686, 2
    %v688 = vadd.f32 %v686, %v687
    %v689 = vrot.slane %v688, 1
    %v690 = vadd.f32 %v688, %v689
    // While loop
    $region14: #{traj_loss_forward.1} parent=1 // loop_pre_header
      _
    $region15: #{traj_loss_forward.1} parent=1 // loop_header
      %s692 = sphi 0, %s1108
      %v693 = vphi 1.0, %v1115
      %v694 = vphi 1.0, %v1116
      %v695 = vphi 1.0, %v1117
      %v696 = vphi 1.0, %v1118
      %v697 = vphi 1.0, %v1119
      %v698 = vphi 1.0, %v1120
      %v699 = vphi 1.0, %v1121
      %v700 = vphi 1.0, %v1122
      %v701 = vphi 1.0, %v1123
      %v702 = vphi 0.0, %v1124
      %v703 = vphi 0.0, %v1125
      %v704 = vphi 0.0, %v1126
      %v705 = vphi 0.0, %v1127
      %v706 = vphi 0.0, %v1128
      %v707 = vphi 0.0, %v1129
      %v708 = vphi 0.0, %v1130
      %v709 = vphi 0.0, %v1131
      %v710 = vphi 0.0, %v1132
      %v711 = vphi %v672, %v1133
      %v712 = vphi %v681, %v1134
      %v713 = vphi %v690, %v1135
      %v714 = vphi 0.0, %v1102
      %v715 = vphi 0.0, %v1103
      %v716 = vphi 0.0, %v1104
      %s717 = sphi 0.0, %s1107
      %p718 = scmp.lt.s32.totalorder %s692, 20
      %p719 = scmp.lt.f32.partialorder %s717, 0.5
      %p720 = pnand %p718, %p719
      %p721 = pneg %p720
    $region16: #{traj_loss_forward.1} parent=1 // loop_header_branch
      %723 = sbr.rel (%p720) target = $region20
    $region17: #{traj_loss_forward.1} parent=1 // loop_body
      %v724 = vadd.f32 %v615, %v702
      %v725 = vadd.f32 %v616, %v703
      %v726 = vadd.f32 %v617, %v704
      %v727 = vadd.f32 %v618, %v705
      %v728 = vadd.f32 %v619, %v706
      %v729 = vadd.f32 %v620, %v707
      %v730 = vadd.f32 %v724, %v708
      %v731 = vadd.f32 %v725, %v708
      %v732 = vadd.f32 %v726, %v709
      %v733 = vadd.f32 %v727, %v709
      %v734 = vadd.f32 %v728, %v710
      %v735 = vadd.f32 %v729, %v710
      %v736 = vsub.f32 0.0, %v730
      %v737 = vsub.f32 0.0, %v731
      %v738 = vsub.f32 0.0, %v732
      %v739 = vsub.f32 0.0, %v733
      %v740 = vsub.f32 0.0, %v734
      %v741 = vsub.f32 0.0, %v735
      %v742 = vsub.f32 %v736, 3.675754
      %v743 = vsub.f32 %v737, 3.675754
      %v744 = vsub.f32 %v738, 3.675754
      %v745 = vsub.f32 %v739, 3.675754
      %v746 = vsub.f32 %v740, 3.675754
      %v747 = vsub.f32 %v741, 3.675754
      %v748 = vadd.f32 %v742, -5.5451775
      %v749 = vadd.f32 %v743, -5.5451775
      %v750 = vadd.f32 %v744, -5.5451775
      %v751 = vadd.f32 %v745, -5.5451775
      %v752 = vadd.f32 %v746, -5.5451775
      %v753 = vadd.f32 %v747, -5.5451775
      %v754 = vmul.f32 %v748, 1.442695
      %v755 = vpow.pop %v754
      %v756 = vmul.f32 %v749, 1.442695
      %v757 = vpow.pop %v756
      %v758 = vmul.f32 %v750, 1.442695
      %v759 = vpow.pop %v758
      %v760 = vmul.f32 %v751, 1.442695
      %v761 = vpow.pop %v760
      %v762 = vmul.f32 %v752, 1.442695
      %v763 = vpow.pop %v762
      %v764 = vmul.f32 %v753, 1.442695
      %v765 = vpow.pop %v764
      %v766 = vrcp.pop %v711
      %v767 = vmul.f32 %v711, %v766
      %v768 = vsub.f32 1.0, %v767
      %v769 = vmul.f32 %v766, %v768
      %v770 = vadd.f32 %v766, %v769
      %vm771 = vweird.f32 %v711
      %vm772 = vweird.f32 %v766
      %vm773 = vmor %vm771, %vm772
      %v774 = vsel %vm773, %v766, %v770
      %v775 = vand.u32 2147483647, %v711
      %vm776 = vcmp.eq.f32.partialorder %v775, 8.507059e+37
      %v777 = vand.u32 %v711, 2147483648
      %v778 = vor.u32 1.1754944e-38, %v777
      %v779 = vsel %vm776, %v778, %v774
      %v780 = vmul.f32 0.0625, %v779
      %v781 = vrcp.pop %v712
      %v782 = vmul.f32 %v712, %v781
      %v783 = vsub.f32 1.0, %v782
      %v784 = vmul.f32 %v781, %v783
      %v785 = vadd.f32 %v781, %v784
      %vm786 = vweird.f32 %v712
      %vm787 = vweird.f32 %v781
      %vm788 = vmor %vm786, %vm787
      %v789 = vsel %vm788, %v781, %v785
      %v790 = vand.u32 2147483647, %v712
      %vm791 = vcmp.eq.f32.partialorder %v790, 8.507059e+37
      %v792 = vand.u32 %v712, 2147483648
      %v793 = vor.u32 1.1754944e-38, %v792
      %v794 = vsel %vm791, %v793, %v789
      %v795 = vmul.f32 0.0625, %v794
      %v796 = vrcp.pop %v713
      %v797 = vmul.f32 %v713, %v796
      %v798 = vsub.f32 1.0, %v797
      %v799 = vmul.f32 %v796, %v798
      %v800 = vadd.f32 %v796, %v799
      %vm801 = vweird.f32 %v713
      %vm802 = vweird.f32 %v796
      %vm803 = vmor %vm801, %vm802
      %v804 = vsel %vm803, %v796, %v800
      %v805 = vand.u32 2147483647, %v713
      %vm806 = vcmp.eq.f32.partialorder %v805, 8.507059e+37
      %v807 = vand.u32 %v713, 2147483648
      %v808 = vor.u32 1.1754944e-38, %v807
      %v809 = vsel %vm806, %v808, %v804
      %v810 = vmul.f32 0.0625, %v809
      %v811 = vmul.f32 %v755, %v780
      %v812 = vmul.f32 %v757, %v780
      %v813 = vmul.f32 %v759, %v795
      %v814 = vmul.f32 %v761, %v795
      %v815 = vmul.f32 %v763, %v810
      %v816 = vmul.f32 %v765, %v810
      %v817 = vsel %vm663, %v811, 0.0
      %818 = vadd.xlane.f32.xlu0 %v817
      %v819 = vpop.xlane.xlu0 %818
      %v820 = vsel %vm663, %v812, 0.0
      %821 = vadd.xlane.f32.xlu0 %v820
      %v822 = vpop.xlane.xlu0 %821
      %v823 = vsel %vm663, %v813, 0.0
      %824 = vadd.xlane.f32.xlu0 %v823
      %v825 = vpop.xlane.xlu0 %824
      %v826 = vsel %vm663, %v814, 0.0
      %827 = vadd.xlane.f32.xlu0 %v826
      %v828 = vpop.xlane.xlu0 %827
      %v829 = vsel %vm663, %v815, 0.0
      %830 = vadd.xlane.f32.xlu0 %v829
      %v831 = vpop.xlane.xlu0 %830
      %v832 = vsel %vm663, %v816, 0.0
      %833 = vadd.xlane.f32.xlu0 %v832
      %v834 = vpop.xlane.xlu0 %833
      %v835 = vrcp.pop %v819
      %v836 = vmul.f32 %v819, %v835
      %v837 = vsub.f32 1.0, %v836
      %v838 = vmul.f32 %v835, %v837
      %v839 = vadd.f32 %v835, %v838
      %vm840 = vweird.f32 %v819
      %vm841 = vweird.f32 %v835
      %vm842 = vmor %vm840, %vm841
      %v843 = vsel %vm842, %v835, %v839
      %v844 = vand.u32 2147483647, %v819
      %vm845 = vcmp.eq.f32.partialorder %v844, 8.507059e+37
      %v846 = vand.u32 %v819, 2147483648
      %v847 = vor.u32 1.1754944e-38, %v846
      %v848 = vsel %vm845, %v847, %v843
      %v849 = vmul.f32 0.0625, %v848
      %v850 = vrcp.pop %v822
      %v851 = vmul.f32 %v822, %v850
      %v852 = vsub.f32 1.0, %v851
      %v853 = vmul.f32 %v850, %v852
      %v854 = vadd.f32 %v850, %v853
      %vm855 = vweird.f32 %v822
      %vm856 = vweird.f32 %v850
      %vm857 = vmor %vm855, %vm856
      %v858 = vsel %vm857, %v850, %v854
      %v859 = vand.u32 2147483647, %v822
      %vm860 = vcmp.eq.f32.partialorder %v859, 8.507059e+37
      %v861 = vand.u32 %v822, 2147483648
      %v862 = vor.u32 1.1754944e-38, %v861
      %v863 = vsel %vm860, %v862, %v858
      %v864 = vmul.f32 0.0625, %v863
      %v865 = vrcp.pop %v825
      %v866 = vmul.f32 %v825, %v865
      %v867 = vsub.f32 1.0, %v866
      %v868 = vmul.f32 %v865, %v867
      %v869 = vadd.f32 %v865, %v868
      %vm870 = vweird.f32 %v825
      %vm871 = vweird.f32 %v865
      %vm872 = vmor %vm870, %vm871
      %v873 = vsel %vm872, %v865, %v869
      %v874 = vand.u32 2147483647, %v825
      %vm875 = vcmp.eq.f32.partialorder %v874, 8.507059e+37
      %v876 = vand.u32 %v825, 2147483648
      %v877 = vor.u32 1.1754944e-38, %v876
      %v878 = vsel %vm875, %v877, %v873
      %v879 = vmul.f32 0.0625, %v878
      %v880 = vrcp.pop %v828
      %v881 = vmul.f32 %v828, %v880
      %v882 = vsub.f32 1.0, %v881
      %v883 = vmul.f32 %v880, %v882
      %v884 = vadd.f32 %v880, %v883
      %vm885 = vweird.f32 %v828
      %vm886 = vweird.f32 %v880
      %vm887 = vmor %vm885, %vm886
      %v888 = vsel %vm887, %v880, %v884
      %v889 = vand.u32 2147483647, %v828
      %vm890 = vcmp.eq.f32.partialorder %v889, 8.507059e+37
      %v891 = vand.u32 %v828, 2147483648
      %v892 = vor.u32 1.1754944e-38, %v891
      %v893 = vsel %vm890, %v892, %v888
      %v894 = vmul.f32 0.0625, %v893
      %v895 = vrcp.pop %v831
      %v896 = vmul.f32 %v831, %v895
      %v897 = vsub.f32 1.0, %v896
      %v898 = vmul.f32 %v895, %v897
      %v899 = vadd.f32 %v895, %v898
      %vm900 = vweird.f32 %v831
      %vm901 = vweird.f32 %v895
      %vm902 = vmor %vm900, %vm901
      %v903 = vsel %vm902, %v895, %v899
      %v904 = vand.u32 2147483647, %v831
      %vm905 = vcmp.eq.f32.partialorder %v904, 8.507059e+37
      %v906 = vand.u32 %v831, 2147483648
      %v907 = vor.u32 1.1754944e-38, %v906
      %v908 = vsel %vm905, %v907, %v903
      %v909 = vmul.f32 0.0625, %v908
      %v910 = vrcp.pop %v834
      %v911 = vmul.f32 %v834, %v910
      %v912 = vsub.f32 1.0, %v911
      %v913 = vmul.f32 %v910, %v912
      %v914 = vadd.f32 %v910, %v913
      %vm915 = vweird.f32 %v834
      %vm916 = vweird.f32 %v910
      %vm917 = vmor %vm915, %vm916
      %v918 = vsel %vm917, %v910, %v914
      %v919 = vand.u32 2147483647, %v834
      %vm920 = vcmp.eq.f32.partialorder %v919, 8.507059e+37
      %v921 = vand.u32 %v834, 2147483648
      %v922 = vor.u32 1.1754944e-38, %v921
      %v923 = vsel %vm920, %v922, %v918
      %v924 = vmul.f32 0.0625, %v923
      %v925 = vmul.f32 %v755, %v849
      %v926 = vmul.f32 %v757, %v864
      %v927 = vmul.f32 %v759, %v879
      %v928 = vmul.f32 %v761, %v894
      %v929 = vmul.f32 %v763, %v909
      %v930 = vmul.f32 %v765, %v924
      %v931 = vsel %vm663, %v925, 0.0
      %v932 = vsel %vm663, %v926, 0.0
      %v933 = vadd.f32 %v931, %v932
      %v934 = vrot.slane %v933, 4
      %v935 = vadd.f32 %v933, %v934
      %v936 = vrot.slane %v935, 2
      %v937 = vadd.f32 %v935, %v936
      %v938 = vrot.slane %v937, 1
      %v939 = vadd.f32 %v937, %v938
      %v940 = vsel %vm663, %v927, 0.0
      %v941 = vsel %vm663, %v928, 0.0
      %v942 = vadd.f32 %v940, %v941
      %v943 = vrot.slane %v942, 4
      %v944 = vadd.f32 %v942, %v943
      %v945 = vrot.slane %v944, 2
      %v946 = vadd.f32 %v944, %v945
      %v947 = vrot.slane %v946, 1
      %v948 = vadd.f32 %v946, %v947
      %v949 = vsel %vm663, %v929, 0.0
      %v950 = vsel %vm663, %v930, 0.0
      %v951 = vadd.f32 %v949, %v950
      %v952 = vrot.slane %v951, 4
      %v953 = vadd.f32 %v951, %v952
      %v954 = vrot.slane %v953, 2
      %v955 = vadd.f32 %v953, %v954
      %v956 = vrot.slane %v955, 1
      %v957 = vadd.f32 %v955, %v956
      %v958 = vmul.f32 %v780, %v939
      %v959 = vmul.f32 %v795, %v948
      %v960 = vmul.f32 %v810, %v957
      %v961 = vsub.f32 %v958, 0.0625
      %v962 = vsub.f32 %v959, 0.0625
      %v963 = vsub.f32 %v960, 0.0625
      %v964 = vand.u32 2147483647, %v961
      %v965 = vand.u32 2147483647, %v962
      %v966 = vand.u32 2147483647, %v963
      %v967 = vsel %vm663, %v964, -inf
      %968 = vmax.xlane.f32.xlu0 %v967
      %v969 = vpop.xlane.xlu0 %968
      %v970 = vsel %vm663, %v965, -inf
      %971 = vmax.xlane.f32.xlu0 %v970
      %v972 = vpop.xlane.xlu0 %971
      %v973 = vsel %vm663, %v966, -inf
      %974 = vmax.xlane.f32.xlu0 %v973
      %v975 = vpop.xlane.xlu0 %974
      %vm976 = vcmp.lt.f32.partialorder %v969, 0.0001
      %vm977 = vcmp.lt.f32.partialorder %v972, 0.0001
      %vm978 = vcmp.lt.f32.partialorder %v975, 0.0001
      %v979 = vmul.f32 %v969, 16.0
      %v980 = vmul.f32 %v972, 16.0
      %v981 = vmul.f32 %v975, 16.0
      %vm982 = vcmp.lt.f32.partialorder %v979, 0.0001
      %vm983 = vcmp.lt.f32.partialorder %v980, 0.0001
      %vm984 = vcmp.lt.f32.partialorder %v981, 0.0001
      %vm985 = vmor %vm976, %vm982
      %vm986 = vmor %vm977, %vm983
      %vm987 = vmor %vm978, %vm984
      %v988 = vand.u32 2147483647, %v849
      %v989 = vand.u32 2147483647, %v864
      %v990 = vand.u32 2147483647, %v879
      %v991 = vand.u32 2147483647, %v894
      %v992 = vand.u32 2147483647, %v909
      %v993 = vand.u32 2147483647, %v924
      %v994 = vmax.f32 %v988, %v989
      %v995 = vrot.slane %v994, 4
      %v996 = vmax.f32 %v994, %v995
      %v997 = vrot.slane %v996, 2
      %v998 = vmax.f32 %v996, %v997
      %v999 = vrot.slane %v998, 1
      %v1000 = vmax.f32 %v998, %v999
      %v1001 = vmax.f32 %v990, %v991
      %v1002 = vrot.slane %v1001, 4
      %v1003 = vmax.f32 %v1001, %v1002
      %v1004 = vrot.slane %v1003, 2
      %v1005 = vmax.f32 %v1003, %v1004
      %v1006 = vrot.slane %v1005, 1
      %v1007 = vmax.f32 %v1005, %v1006
      %v1008 = vmax.f32 %v992, %v993
      %v1009 = vrot.slane %v1008, 4
      %v1010 = vmax.f32 %v1008, %v1009
      %v1011 = vrot.slane %v1010, 2
      %v1012 = vmax.f32 %v1010, %v1011
      %v1013 = vrot.slane %v1012, 1
      %v1014 = vmax.f32 %v1012, %v1013
      %v1015 = vand.u32 2147483647, %v780
      %v1016 = vand.u32 2147483647, %v795
      %v1017 = vand.u32 2147483647, %v810
      %v1018 = vsel %vm663, %v1015, -inf
      %1019 = vmax.xlane.f32.xlu0 %v1018
      %v1020 = vpop.xlane.xlu0 %1019
      %v1021 = vsel %vm663, %v1016, -inf
      %1022 = vmax.xlane.f32.xlu0 %v1021
      %v1023 = vpop.xlane.xlu0 %1022
      %v1024 = vsel %vm663, %v1017, -inf
      %1025 = vmax.xlane.f32.xlu0 %v1024
      %v1026 = vpop.xlane.xlu0 %1025
      %v1027 = vmax.f32 %v1000, %v1020
      %v1028 = vmax.f32 %v1007, %v1023
      %v1029 = vmax.f32 %v1014, %v1026
      %vm1030 = vcmp.gt.f32.partialorder %v1027, 100.0
      %vm1031 = vcmp.gt.f32.partialorder %v1028, 100.0
      %vm1032 = vcmp.gt.f32.partialorder %v1029, 100.0
      %vm1033 = vmxor %vm985, 1
      %vm1034 = vmxor %vm986, 1
      %vm1035 = vmxor %vm987, 1
      %vm1036 = vmand %vm1030, %vm1033
      %vm1037 = vmand %vm1031, %vm1034
      %vm1038 = vmand %vm1032, %vm1035
      %v1039 = vlog2.pop %v849
      %v1040 = vmul.f32 %v1039, 0.6931472
      %v1041 = vlog2.pop %v864
      %v1042 = vmul.f32 %v1041, 0.6931472
      %v1043 = vlog2.pop %v879
      %v1044 = vmul.f32 %v1043, 0.6931472
      %v1045 = vlog2.pop %v894
      %v1046 = vmul.f32 %v1045, 0.6931472
      %v1047 = vlog2.pop %v909
      %v1048 = vmul.f32 %v1047, 0.6931472
      %v1049 = vlog2.pop %v924
      %v1050 = vmul.f32 %v1049, 0.6931472
      %v1051 = vsub.f32 %v702, %v1040
      %v1052 = vsub.f32 %v703, %v1042
      %v1053 = vsub.f32 %v704, %v1044
      %v1054 = vsub.f32 %v705, %v1046
      %v1055 = vsub.f32 %v706, %v1048
      %v1056 = vsub.f32 %v707, %v1050
      %v1057 = vsel %vm1036, 1, 0
      %v1058 = vsel %vm1037, 1, 0
      %v1059 = vsel %vm1038, 1, 0
      %vm1060 = vcmp.eq.s32.totalorder %v1057, 1
      %vm1061 = vcmp.eq.s32.totalorder %v1058, 1
      %vm1062 = vcmp.eq.s32.totalorder %v1059, 1
      %v1063 = vsel %vm1060, %v1051, %v702
      %v1064 = vsel %vm1060, %v1052, %v703
      %v1065 = vsel %vm1061, %v1053, %v704
      %v1066 = vsel %vm1061, %v1054, %v705
      %v1067 = vsel %vm1062, %v1055, %v706
      %v1068 = vsel %vm1062, %v1056, %v707
      %v1069 = vlog2.pop %v780
      %v1070 = vmul.f32 %v1069, 0.6931472
      %v1071 = vlog2.pop %v795
      %v1072 = vmul.f32 %v1071, 0.6931472
      %v1073 = vlog2.pop %v810
      %v1074 = vmul.f32 %v1073, 0.6931472
      %v1075 = vsub.f32 %v708, %v1070
      %v1076 = vsub.f32 %v709, %v1072
      %v1077 = vsub.f32 %v710, %v1074
      %v1078 = vsel %vm1060, %v1075, %v708
      %v1079 = vsel %vm1061, %v1076, %v709
      %v1080 = vsel %vm1062, %v1077, %v710
      %v1081 = vsel %vm1060, 1.0, %v849
      %v1082 = vsel %vm1060, 1.0, %v864
      %v1083 = vsel %vm1061, 1.0, %v879
      %v1084 = vsel %vm1061, 1.0, %v894
      %v1085 = vsel %vm1062, 1.0, %v909
      %v1086 = vsel %vm1062, 1.0, %v924
      %v1087 = vsel %vm1060, 1.0, %v780
      %v1088 = vsel %vm1061, 1.0, %v795
      %v1089 = vsel %vm1062, 1.0, %v810
      %v1090 = vsel %vm1060, %v958, %v939
      %v1091 = vsel %vm1061, %v959, %v948
      %v1092 = vsel %vm1062, %v960, %v957
      %vm1093 = vcmp.lt.f32.partialorder %v714, 0.5
      %vm1094 = vcmp.lt.f32.partialorder %v715, 0.5
      %vm1095 = vcmp.lt.f32.partialorder %v716, 0.5
      %v1096 = vsel %vm985, 1, 0
      %v1097 = vsel %vm986, 1, 0
      %v1098 = vsel %vm987, 1, 0
      %v1099 = vcvt.s32.f32 %v1096
      %v1100 = vcvt.s32.f32 %v1097
      %v1101 = vcvt.s32.f32 %v1098
      %v1102 = vmax.f32 %v714, %v1099
      %v1103 = vmax.f32 %v715, %v1100
      %v1104 = vmax.f32 %v716, %v1101
      %v1105 = vmin.f32 %v1102, %v1103
      %v1106 = vmin.f32 %v1105, %v1104
      %s1107 = vtos %v1106
      %s1108 = sadd.s32 %s692, 1
      %v1109 = vsel %vm1093, 1, 0
      %v1110 = vsel %vm1094, 1, 0
      %v1111 = vsel %vm1095, 1, 0
      %vm1112 = vcmp.eq.s32.totalorder %v1109, 1
      %vm1113 = vcmp.eq.s32.totalorder %v1110, 1
      %vm1114 = vcmp.eq.s32.totalorder %v1111, 1
      %v1115 = vsel %vm1112, %v1081, %v693
      %v1116 = vsel %vm1112, %v1082, %v694
      %v1117 = vsel %vm1113, %v1083, %v695
      %v1118 = vsel %vm1113, %v1084, %v696
      %v1119 = vsel %vm1114, %v1085, %v697
      %v1120 = vsel %vm1114, %v1086, %v698
      %v1121 = vsel %vm1112, %v1087, %v699
      %v1122 = vsel %vm1113, %v1088, %v700
      %v1123 = vsel %vm1114, %v1089, %v701
      %v1124 = vsel %vm1112, %v1063, %v702
      %v1125 = vsel %vm1112, %v1064, %v703
      %v1126 = vsel %vm1113, %v1065, %v704
      %v1127 = vsel %vm1113, %v1066, %v705
      %v1128 = vsel %vm1114, %v1067, %v706
      %v1129 = vsel %vm1114, %v1068, %v707
      %v1130 = vsel %vm1112, %v1078, %v708
      %v1131 = vsel %vm1113, %v1079, %v709
      %v1132 = vsel %vm1114, %v1080, %v710
      %v1133 = vsel %vm1112, %v1090, %v711
      %v1134 = vsel %vm1113, %v1091, %v712
      %v1135 = vsel %vm1114, %v1092, %v713
    $region18: #{traj_loss_forward.1} parent=1 // loop_footer
      _
    $region19: #{traj_loss_forward.1} parent=1 // loop_footer_branch
      %691 = sbr.rel target = $region15
    $region20: #{traj_loss_forward.1} parent=1 // loop_exit
      _
    %v1136 = vlog2.pop %v693
    %v1137 = vmul.f32 %v1136, 0.6931472
    %v1138 = vlog2.pop %v694
    %v1139 = vmul.f32 %v1138, 0.6931472
    %v1140 = vlog2.pop %v695
    %v1141 = vmul.f32 %v1140, 0.6931472
    %v1142 = vlog2.pop %v696
    %v1143 = vmul.f32 %v1142, 0.6931472
    %v1144 = vlog2.pop %v697
    %v1145 = vmul.f32 %v1144, 0.6931472
    %v1146 = vlog2.pop %v698
    %v1147 = vmul.f32 %v1146, 0.6931472
    %v1148 = vmul.f32 %v1137, -1.0
    %v1149 = vmul.f32 %v1139, -1.0
    %v1150 = vmul.f32 %v1141, -1.0
    %v1151 = vmul.f32 %v1143, -1.0
    %v1152 = vmul.f32 %v1145, -1.0
    %v1153 = vmul.f32 %v1147, -1.0
    %v1154 = vadd.f32 %v1148, %v702
    %v1155 = vadd.f32 %v1149, %v703
    %v1156 = vadd.f32 %v1150, %v704
    %v1157 = vadd.f32 %v1151, %v705
    %v1158 = vadd.f32 %v1152, %v706
    %v1159 = vadd.f32 %v1153, %v707
    %v1160 = vlog2.pop %v699
    %v1161 = vmul.f32 %v1160, 0.6931472
    %v1162 = vlog2.pop %v700
    %v1163 = vmul.f32 %v1162, 0.6931472
    %v1164 = vlog2.pop %v701
    %v1165 = vmul.f32 %v1164, 0.6931472
    %v1166 = vmul.f32 %v1161, -1.0
    %v1167 = vmul.f32 %v1163, -1.0
    %v1168 = vmul.f32 %v1165, -1.0
    %v1169 = vadd.f32 %v1166, %v708
    %v1170 = vadd.f32 %v1167, %v709
    %v1171 = vadd.f32 %v1168, %v710
    %v1172 = vsub.f32 0.0, %v615
    %v1173 = vsub.f32 0.0, %v616
    %v1174 = vsub.f32 0.0, %v617
    %v1175 = vsub.f32 0.0, %v618
    %v1176 = vsub.f32 0.0, %v619
    %v1177 = vsub.f32 0.0, %v620
    %v1178 = vsub.f32 %v1172, %v1169
    %v1179 = vsub.f32 %v1173, %v1169
    %v1180 = vsub.f32 %v1174, %v1170
    %v1181 = vsub.f32 %v1175, %v1170
    %v1182 = vsub.f32 %v1176, %v1171
    %v1183 = vsub.f32 %v1177, %v1171
    %v1184 = vadd.f32 %v1178, -2.7725887
    %v1185 = vadd.f32 %v1179, -2.7725887
    %v1186 = vadd.f32 %v1180, -2.7725887
    %v1187 = vadd.f32 %v1181, -2.7725887
    %v1188 = vadd.f32 %v1182, -2.7725887
    %v1189 = vadd.f32 %v1183, -2.7725887
    %v1190 = vsel %vm663, %v1184, -inf
    %1191 = vmax.xlane.f32.xlu0 %v1190
    %v1192 = vpop.xlane.xlu0 %1191
    %v1193 = vsel %vm663, %v1185, -inf
    %1194 = vmax.xlane.f32.xlu0 %v1193
    %v1195 = vpop.xlane.xlu0 %1194
    %v1196 = vsel %vm663, %v1186, -inf
    %1197 = vmax.xlane.f32.xlu0 %v1196
    %v1198 = vpop.xlane.xlu0 %1197
    %v1199 = vsel %vm663, %v1187, -inf
    %1200 = vmax.xlane.f32.xlu0 %v1199
    %v1201 = vpop.xlane.xlu0 %1200
    %v1202 = vsel %vm663, %v1188, -inf
    %1203 = vmax.xlane.f32.xlu0 %v1202
    %v1204 = vpop.xlane.xlu0 %1203
    %v1205 = vsel %vm663, %v1189, -inf
    %1206 = vmax.xlane.f32.xlu0 %v1205
    %v1207 = vpop.xlane.xlu0 %1206
    %v1208 = vsub.f32 %v1184, %v1192
    %v1209 = vsub.f32 %v1185, %v1195
    %v1210 = vsub.f32 %v1186, %v1198
    %v1211 = vsub.f32 %v1187, %v1201
    %v1212 = vsub.f32 %v1188, %v1204
    %v1213 = vsub.f32 %v1189, %v1207
    %v1214 = vmul.f32 %v1208, 1.442695
    %v1215 = vpow.pop %v1214
    %v1216 = vmul.f32 %v1209, 1.442695
    %v1217 = vpow.pop %v1216
    %v1218 = vmul.f32 %v1210, 1.442695
    %v1219 = vpow.pop %v1218
    %v1220 = vmul.f32 %v1211, 1.442695
    %v1221 = vpow.pop %v1220
    %v1222 = vmul.f32 %v1212, 1.442695
    %v1223 = vpow.pop %v1222
    %v1224 = vmul.f32 %v1213, 1.442695
    %v1225 = vpow.pop %v1224
    %v1226 = vsel %vm663, %v1215, 0.0
    %1227 = vadd.xlane.f32.xlu0 %v1226
    %v1228 = vpop.xlane.xlu0 %1227
    %v1229 = vsel %vm663, %v1217, 0.0
    %1230 = vadd.xlane.f32.xlu0 %v1229
    %v1231 = vpop.xlane.xlu0 %1230
    %v1232 = vsel %vm663, %v1219, 0.0
    %1233 = vadd.xlane.f32.xlu0 %v1232
    %v1234 = vpop.xlane.xlu0 %1233
    %v1235 = vsel %vm663, %v1221, 0.0
    %1236 = vadd.xlane.f32.xlu0 %v1235
    %v1237 = vpop.xlane.xlu0 %1236
    %v1238 = vsel %vm663, %v1223, 0.0
    %1239 = vadd.xlane.f32.xlu0 %v1238
    %v1240 = vpop.xlane.xlu0 %1239
    %v1241 = vsel %vm663, %v1225, 0.0
    %1242 = vadd.xlane.f32.xlu0 %v1241
    %v1243 = vpop.xlane.xlu0 %1242
    %v1244 = vlog2.pop %v1228
    %v1245 = vmul.f32 %v1244, 0.6931472
    %v1246 = vlog2.pop %v1231
    %v1247 = vmul.f32 %v1246, 0.6931472
    %v1248 = vlog2.pop %v1234
    %v1249 = vmul.f32 %v1248, 0.6931472
    %v1250 = vlog2.pop %v1237
    %v1251 = vmul.f32 %v1250, 0.6931472
    %v1252 = vlog2.pop %v1240
    %v1253 = vmul.f32 %v1252, 0.6931472
    %v1254 = vlog2.pop %v1243
    %v1255 = vmul.f32 %v1254, 0.6931472
    %v1256 = vadd.f32 %v1192, %v1245
    %v1257 = vadd.f32 %v1195, %v1247
    %v1258 = vadd.f32 %v1198, %v1249
    %v1259 = vadd.f32 %v1201, %v1251
    %v1260 = vadd.f32 %v1204, %v1253
    %v1261 = vadd.f32 %v1207, %v1255
    %v1262 = vsub.f32 %v1256, 3.675754
    %v1263 = vsub.f32 %v1257, 3.675754
    %v1264 = vsub.f32 %v1258, 3.675754
    %v1265 = vsub.f32 %v1259, 3.675754
    %v1266 = vsub.f32 %v1260, 3.675754
    %v1267 = vsub.f32 %v1261, 3.675754
    %v1268 = vsub.f32 %v1172, %v1154
    %v1269 = vsub.f32 %v1173, %v1155
    %v1270 = vsub.f32 %v1174, %v1156
    %v1271 = vsub.f32 %v1175, %v1157
    %v1272 = vsub.f32 %v1176, %v1158
    %v1273 = vsub.f32 %v1177, %v1159
    %v1274 = vadd.f32 %v1268, -2.7725887
    %v1275 = vadd.f32 %v1269, -2.7725887
    %v1276 = vadd.f32 %v1270, -2.7725887
    %v1277 = vadd.f32 %v1271, -2.7725887
    %v1278 = vadd.f32 %v1272, -2.7725887
    %v1279 = vadd.f32 %v1273, -2.7725887
    %v1280 = vsel %vm663, %v1274, -inf
    %v1281 = vsel %vm663, %v1275, -inf
    %v1282 = vmax.f32 %v1280, %v1281
    %v1283 = vrot.slane %v1282, 4
    %v1284 = vmax.f32 %v1282, %v1283
    %v1285 = vrot.slane %v1284, 2
    %v1286 = vmax.f32 %v1284, %v1285
    %v1287 = vrot.slane %v1286, 1
    %v1288 = vmax.f32 %v1286, %v1287
    %v1289 = vsel %vm663, %v1276, -inf
    %v1290 = vsel %vm663, %v1277, -inf
    %v1291 = vmax.f32 %v1289, %v1290
    %v1292 = vrot.slane %v1291, 4
    %v1293 = vmax.f32 %v1291, %v1292
    %v1294 = vrot.slane %v1293, 2
    %v1295 = vmax.f32 %v1293, %v1294
    %v1296 = vrot.slane %v1295, 1
    %v1297 = vmax.f32 %v1295, %v1296
    %v1298 = vsel %vm663, %v1278, -inf
    %v1299 = vsel %vm663, %v1279, -inf
    %v1300 = vmax.f32 %v1298, %v1299
    %v1301 = vrot.slane %v1300, 4
    %v1302 = vmax.f32 %v1300, %v1301
    %v1303 = vrot.slane %v1302, 2
    %v1304 = vmax.f32 %v1302, %v1303
    %v1305 = vrot.slane %v1304, 1
    %v1306 = vmax.f32 %v1304, %v1305
    %v1307 = vsub.f32 %v1274, %v1288
    %v1308 = vsub.f32 %v1275, %v1288
    %v1309 = vsub.f32 %v1276, %v1297
    %v1310 = vsub.f32 %v1277, %v1297
    %v1311 = vsub.f32 %v1278, %v1306
    %v1312 = vsub.f32 %v1279, %v1306
    %v1313 = vmul.f32 %v1307, 1.442695
    %v1314 = vpow.pop %v1313
    %v1315 = vmul.f32 %v1308, 1.442695
    %v1316 = vpow.pop %v1315
    %v1317 = vmul.f32 %v1309, 1.442695
    %v1318 = vpow.pop %v1317
    %v1319 = vmul.f32 %v1310, 1.442695
    %v1320 = vpow.pop %v1319
    %v1321 = vmul.f32 %v1311, 1.442695
    %v1322 = vpow.pop %v1321
    %v1323 = vmul.f32 %v1312, 1.442695
    %v1324 = vpow.pop %v1323
    %v1325 = vsel %vm663, %v1314, 0.0
    %v1326 = vsel %vm663, %v1316, 0.0
    %v1327 = vadd.f32 %v1325, %v1326
    %v1328 = vrot.slane %v1327, 4
    %v1329 = vadd.f32 %v1327, %v1328
    %v1330 = vrot.slane %v1329, 2
    %v1331 = vadd.f32 %v1329, %v1330
    %v1332 = vrot.slane %v1331, 1
    %v1333 = vadd.f32 %v1331, %v1332
    %v1334 = vsel %vm663, %v1318, 0.0
    %v1335 = vsel %vm663, %v1320, 0.0
    %v1336 = vadd.f32 %v1334, %v1335
    %v1337 = vrot.slane %v1336, 4
    %v1338 = vadd.f32 %v1336, %v1337
    %v1339 = vrot.slane %v1338, 2
    %v1340 = vadd.f32 %v1338, %v1339
    %v1341 = vrot.slane %v1340, 1
    %v1342 = vadd.f32 %v1340, %v1341
    %v1343 = vsel %vm663, %v1322, 0.0
    %v1344 = vsel %vm663, %v1324, 0.0
    %v1345 = vadd.f32 %v1343, %v1344
    %v1346 = vrot.slane %v1345, 4
    %v1347 = vadd.f32 %v1345, %v1346
    %v1348 = vrot.slane %v1347, 2
    %v1349 = vadd.f32 %v1347, %v1348
    %v1350 = vrot.slane %v1349, 1
    %v1351 = vadd.f32 %v1349, %v1350
    %v1352 = vlog2.pop %v1333
    %v1353 = vmul.f32 %v1352, 0.6931472
    %v1354 = vlog2.pop %v1342
    %v1355 = vmul.f32 %v1354, 0.6931472
    %v1356 = vlog2.pop %v1351
    %v1357 = vmul.f32 %v1356, 0.6931472
    %v1358 = vadd.f32 %v1288, %v1353
    %v1359 = vadd.f32 %v1297, %v1355
    %v1360 = vadd.f32 %v1306, %v1357
    %v1361 = vsub.f32 %v1358, 3.675754
    %v1362 = vsub.f32 %v1359, 3.675754
    %v1363 = vsub.f32 %v1360, 3.675754
    %v1364 = vadd.f32 %v615, %v1262
    %v1365 = vadd.f32 %v616, %v1263
    %v1366 = vadd.f32 %v617, %v1264
    %v1367 = vadd.f32 %v618, %v1265
    %v1368 = vadd.f32 %v619, %v1266
    %v1369 = vadd.f32 %v620, %v1267
    %v1370 = vadd.f32 %v1364, %v1361
    %v1371 = vadd.f32 %v1365, %v1361
    %v1372 = vadd.f32 %v1366, %v1362
    %v1373 = vadd.f32 %v1367, %v1362
    %v1374 = vadd.f32 %v1368, %v1363
    %v1375 = vadd.f32 %v1369, %v1363
    %v1376 = vsub.f32 0.0, %v1370
    %v1377 = vsub.f32 0.0, %v1371
    %v1378 = vsub.f32 0.0, %v1372
    %v1379 = vsub.f32 0.0, %v1373
    %v1380 = vsub.f32 0.0, %v1374
    %v1381 = vsub.f32 0.0, %v1375
    %v1382 = vsub.f32 %v1376, 3.675754
    %v1383 = vsub.f32 %v1377, 3.675754
    %v1384 = vsub.f32 %v1378, 3.675754
    %v1385 = vsub.f32 %v1379, 3.675754
    %v1386 = vsub.f32 %v1380, 3.675754
    %v1387 = vsub.f32 %v1381, 3.675754
    %v1388 = vadd.f32 %v1382, -5.5451775
    %v1389 = vadd.f32 %v1383, -5.5451775
    %v1390 = vadd.f32 %v1384, -5.5451775
    %v1391 = vadd.f32 %v1385, -5.5451775
    %v1392 = vadd.f32 %v1386, -5.5451775
    %v1393 = vadd.f32 %v1387, -5.5451775
    %v1394 = vmul.f32 %v1388, 1.442695
    %v1395 = vpow.pop %v1394
    %v1396 = vmul.f32 %v1389, 1.442695
    %v1397 = vpow.pop %v1396
    %v1398 = vmul.f32 %v1390, 1.442695
    %v1399 = vpow.pop %v1398
    %v1400 = vmul.f32 %v1391, 1.442695
    %v1401 = vpow.pop %v1400
    %v1402 = vmul.f32 %v1392, 1.442695
    %v1403 = vpow.pop %v1402
    %v1404 = vmul.f32 %v1393, 1.442695
    %v1405 = vpow.pop %v1404
    %v1406 = vsel %vm277, %v1262, 0.0
    %v1407 = vsel %vm277, %v1263, 0.0
    %v1408 = vadd.f32 %v1406, %v1407
    %v1409 = vsel %vm277, %v1264, 0.0
    %v1410 = vadd.f32 %v1408, %v1409
    %v1411 = vsel %vm277, %v1265, 0.0
    %v1412 = vadd.f32 %v1410, %v1411
    %v1413 = vsel %vm277, %v1266, 0.0
    %v1414 = vadd.f32 %v1412, %v1413
    %v1415 = vsel %vm277, %v1267, 0.0
    %v1416 = vadd.f32 %v1414, %v1415
    %1417 = vadd.xlane.f32.xlu0 %v1416
    %v1418 = vpop.xlane.xlu0 %1417
    %v1419 = vrot.slane %v1418, 4
    %v1420 = vadd.f32 %v1418, %v1419
    %v1421 = vrot.slane %v1420, 2
    %v1422 = vadd.f32 %v1420, %v1421
    %v1423 = vrot.slane %v1422, 1
    %v1424 = vadd.f32 %v1422, %v1423
    %s1425 = vtos %v1424
    %vm1426 = vcmask 122880
    %v1427 = vsel %vm1426, %v1361, 0.0
    %v1428 = vsel %vm1426, %v1362, 0.0
    %v1429 = vadd.f32 %v1427, %v1428
    %v1430 = vsel %vm1426, %v1363, 0.0
    %v1431 = vadd.f32 %v1429, %v1430
    %1432 = vadd.xlane.f32.xlu0 %v1431
    %v1433 = vpop.xlane.xlu0 %1432
    %v1434 = vrot.slane %v1433, 4
    %v1435 = vadd.f32 %v1433, %v1434
    %v1436 = vrot.slane %v1435, 2
    %v1437 = vadd.f32 %v1435, %v1436
    %v1438 = vrot.slane %v1437, 1
    %v1439 = vadd.f32 %v1437, %v1438
    %s1440 = vtos %v1439
    %s1441 = sadd.f32 %s1425, %s1440
    %s1442 = ssub.f32 0.0, %s1441
    %s1443 = smul.f32 %s1442, 0.0625
    %v1444 = vsel %vm663, %v1395, 0.0
    %v1445 = vsel %vm663, %v1397, 0.0
    %v1446 = vadd.f32 %v1444, %v1445
    %v1447 = vsel %vm663, %v1399, 0.0
    %v1448 = vadd.f32 %v1446, %v1447
    %v1449 = vsel %vm663, %v1401, 0.0
    %v1450 = vadd.f32 %v1448, %v1449
    %v1451 = vsel %vm663, %v1403, 0.0
    %v1452 = vadd.f32 %v1450, %v1451
    %v1453 = vsel %vm663, %v1405, 0.0
    %v1454 = vadd.f32 %v1452, %v1453
    %1455 = vadd.xlane.f32.xlu0 %v1454
    %v1456 = vpop.xlane.xlu0 %1455
    %v1457 = vrot.slane %v1456, 4
    %v1458 = vadd.f32 %v1456, %v1457
    %v1459 = vrot.slane %v1458, 2
    %v1460 = vadd.f32 %v1458, %v1459
    %v1461 = vrot.slane %v1460, 1
    %v1462 = vadd.f32 %v1460, %v1461
    %s1463 = vtos %v1462
    %s1464 = ssub.f32 %s1443, %s1463
    %s1465 = scalar_lea.smem [#allocation2], 0
    %1466 = sst [smem:[%s1465]] %s1464
    // Predicated region
    $region21: #{traj_loss_forward.1} parent=1 // pred_check
      _
    $region22: #{traj_loss_forward.1} parent=1 // pred_check_branch
      %1468 = sbr.rel (0) target = $region24
    $region23: #{traj_loss_forward.1} parent=1 // pred_region
      %1470 = vsyncadd [#allocation3], 0
      %s1472 = sshll.u32 %s3, 4
      %s1473 = int_to_ptr.vmem [resolvable:$true] %s1472
      %1475 = dma.smem_to_vmem [#allocation2], 16, %s1473, [#allocation3]
    $region24: #{traj_loss_forward.1} parent=1 // pred_fallthru
      _
    // Predicated region
    $region25: #{traj_loss_forward.1} parent=1 // pred_check
      _
    $region26: #{traj_loss_forward.1} parent=1 // pred_check_branch
      %1477 = sbr.rel (0) target = $region28
    $region27: #{traj_loss_forward.1} parent=1 // pred_region
      %1479 = dma.done [#allocation3], 16
    $region28: #{traj_loss_forward.1} parent=1 // pred_fallthru
      _
    %1480 = sfence
    %1481 = vsyncpa [#allocation3], 1

</llo_original>
